<compile_context>
chip_gen: v7x
topology: tpu7x:2x2x1
jax: 0.10.0
libtpu: 0.0.40
codegen_flags: <defaults>
</compile_context>

<pallas_src>
import functools

import jax
import jax.numpy as jnp
from jax import lax
from jax.experimental import pallas as pl
from jax.experimental.pallas import tpu as pltpu


# ----------------------------------------------------------------------------
# Small helpers
# ----------------------------------------------------------------------------
def _round_up(x, m):
    return ((x + m - 1) // m) * m


def _largest_divisor_leq(n, cap):
    for d in range(min(n, cap), 0, -1):
        if n % d == 0:
            return d
    return 1


def _unroll_factor(n, cap=8):
    """Largest unroll factor <= cap that divides n (bounds live ranges)."""
    for u in range(min(cap, n), 0, -1):
        if n % u == 0:
            return u
    return 1


@functools.lru_cache(maxsize=None)
def _vmem_config():
    """(vmem_limit_bytes, tiling_budget_bytes) derived from the hardware."""
    try:
        cap = int(pltpu.get_tpu_info().vmem_capacity_bytes)
    except Exception:
        cap = 64 * 1024 * 1024            # conservative (v7x per-TC) fallback
    limit = (cap * 3) // 4                # ~96 MiB on v5e/v6e, ~48 MiB on v7x
    budget = (limit * 4) // 5             # ~20% headroom for compiler scratch
    return limit, budget


# ----------------------------------------------------------------------------
# Pallas kernels
# ----------------------------------------------------------------------------
def linear_kernel(x_ref, w_ref, b_ref, o_ref, acc_ref):
    """One (TM, TK) x (TK, TN) tile of  x @ W + b  with f32 accumulation.

    Grid = (rows, cols, k); the k axis is a reduction ("arbitrary") with a
    resident f32 accumulator; the output tile is written once, on the last k.
    """
    kk = pl.program_id(2)

    @pl.when(kk == 0)
    def _():
        acc_ref[...] = jnp.zeros_like(acc_ref)

    acc_ref[...] += jnp.dot(x_ref[...], w_ref[...],
                            preferred_element_type=jnp.float32)

    @pl.when(kk == pl.num_programs(2) - 1)
    def _():
        o_ref[...] = (acc_ref[...] + b_ref[...]).astype(o_ref.dtype)


def lstm_layer_kernel(t_blk, nhid, seq_len, needs_mask, unroll,
                      xw_ref, whh_ref, h0_ref, c0_ref,
                      out_ref, hN_ref, cN_ref,
                      h_scr, c_scr):
    """One grid step == t_blk timesteps of a single LSTM layer.

    xw_ref already holds x_t @ W_ih + (b_ih + b_hh); only h @ W_hh is done
    here.  h/c are carried as register values across the t_blk steps; VMEM
    scratch is touched once per block (carry across grid steps).  Gate layout
    is (i, f, o, g): one sigmoid over [:, :3H], one tanh over [:, 3H:].
    """
    tb = pl.program_id(0)
    H = nhid

    @pl.when(tb == 0)
    def _():
        h_scr[...] = h0_ref[...]
        c_scr[...] = c0_ref[...]

    w_hh = whh_ref[...]                               # (H, 4H) bf16, loaded once
    h = h_scr[...]                                    # (B, H) f32, one load/block
    c = c_scr[...]

    def cell(i, carry):
        h, c = carry
        gates = xw_ref[i] + jnp.dot(h.astype(w_hh.dtype), w_hh,
                                    preferred_element_type=jnp.float32)
        sig = jax.nn.sigmoid(gates[:, :3 * H])        # i, f, o (contiguous)
        i_g = sig[:, 0 * H:1 * H]
        f_g = sig[:, 1 * H:2 * H]
        o_g = sig[:, 2 * H:3 * H]
        g_g = jnp.tanh(gates[:, 3 * H:4 * H])
        c_new = f_g * c + i_g * g_g
        h_new = o_g * jnp.tanh(c_new)
        if needs_mask:                                # static flag; only for padded tail
            valid = (tb * t_blk + i) < seq_len
            h_new = jnp.where(valid, h_new, h)
            c_new = jnp.where(valid, c_new, c)
        out_ref[i] = h_new.astype(out_ref.dtype)      # bf16 layer output
        return h_new, c_new

    if unroll >= t_blk:                               # small block: plain unroll
        for i in range(t_blk):
            h, c = cell(i, (h, c))
    else:                                             # big block: bounded live ranges
        h, c = lax.fori_loop(0, t_blk, cell, (h, c), unroll=unroll)

    h_scr[...] = h                                    # one store/block
    c_scr[...] = c

    @pl.when(tb == pl.num_programs(0) - 1)            # final state written once
    def _():
        hN_ref[...] = h
        cN_ref[...] = c


# ----------------------------------------------------------------------------
# Wrappers
# ----------------------------------------------------------------------------
def pallas_linear(x, w_p, b_p, out_dim, *, tm=256, tn=512):
    """y = x @ w_p + b_p, cropped to out_dim columns.

    w_p : (K, M_pad) bf16, columns pre-padded to a multiple of 128 at init.
    b_p : (1, M_pad) f32.
    x   : (rows, K)  bf16 (activations are handed over in bf16).
    """
    vmem_limit, _ = _vmem_config()
    n_rows, k = x.shape
    kw, m_pad = w_p.shape
    assert kw == k and b_p.shape == (1, m_pad)

    tm_eff = min(tm, _round_up(n_rows, 8))
    n_pad = _round_up(n_rows, tm_eff)
    tn_eff = _largest_divisor_leq(m_pad // 128, max(1, tn // 128)) * 128
    # K tiling only for large reductions; small K uses a single full-K block
    # (full-extent blocks are exempt from the 128-divisibility rule).
    tk_eff = 512 if (k > 2048 and k % 512 == 0) else k

    x_p = x if n_pad == n_rows else jnp.pad(x, ((0, n_pad - n_rows), (0, 0)))

    cost = pl.CostEstimate(
        flops=int(2 * n_pad * k * m_pad),
        transcendentals=0,
        bytes_accessed=int(x_p.size * x_p.dtype.itemsize
                           + w_p.size * w_p.dtype.itemsize
                           + b_p.size * 4 + n_pad * m_pad * 4))

    out = pl.pallas_call(
        linear_kernel,
        out_shape=jax.ShapeDtypeStruct((n_pad, m_pad), jnp.float32),
        grid_spec=pltpu.PrefetchScalarGridSpec(
            num_scalar_prefetch=0,
            grid=(n_pad // tm_eff, m_pad // tn_eff, k // tk_eff),
            in_specs=[
                pl.BlockSpec((tm_eff, tk_eff), lambda i, j, kk: (i, kk)),
                pl.BlockSpec((tk_eff, tn_eff), lambda i, j, kk: (kk, j)),
                pl.BlockSpec((1, tn_eff), lambda i, j, kk: (0, j)),
            ],
            out_specs=pl.BlockSpec((tm_eff, tn_eff), lambda i, j, kk: (i, j)),
            scratch_shapes=[pltpu.VMEM((tm_eff, tn_eff), jnp.float32)],
        ),
        compiler_params=pltpu.CompilerParams(
            dimension_semantics=("parallel", "parallel", "arbitrary"),
            vmem_limit_bytes=vmem_limit),
        cost_estimate=cost,
    )(x_p, w_p, b_p)
    return out[:n_rows, :out_dim]


def lstm_layer(xw, h0_l, c0_l, whh_l):
    """Run one LSTM layer over the whole sequence (recurrence only)."""
    vmem_limit, budget = _vmem_config()
    S, B, G = xw.shape
    H = G // 4

    # VMEM-budget-aware time block (double-buffered xw in + bf16 out per step).
    per_t = 2 * B * G * xw.dtype.itemsize + 2 * B * H * 2
    fixed = (2 * H * G * 2            # W_hh (bf16), double-buffered
             + 8 * B * H * 4          # h0/c0 in + hN/cN out, double-buffered
             + 2 * B * H * 4)         # h/c scratch
    t_cap = int(max(1, min(64, (budget - fixed) // per_t)))
    d = _largest_divisor_leq(S, t_cap)
    if 2 * d >= min(t_cap, S):        # good divisor -> no tail padding needed
        t_blk = d
    else:                             # prime/odd S: pad and mask the tail
        t_blk = min(t_cap, S)
    S_pad = _round_up(S, t_blk)
    needs_mask = S_pad != S
    if needs_mask:
        xw = jnp.pad(xw, ((0, S_pad - S), (0, 0), (0, 0)))
    unroll = _unroll_factor(t_blk, 8)

    kernel = functools.partial(lstm_layer_kernel, t_blk, H, S, needs_mask, unroll)

    cost = pl.CostEstimate(
        flops=int(2 * S_pad * B * H * G + 12 * S_pad * B * H),
        transcendentals=int(5 * S_pad * B * H),
        bytes_accessed=int(xw.size * xw.dtype.itemsize + S_pad * B * H * 2
                           + whh_l.size * whh_l.dtype.itemsize + 6 * B * H * 4))

    grid_spec = pltpu.PrefetchScalarGridSpec(
        num_scalar_prefetch=0,
        grid=(S_pad // t_blk,),
        in_specs=[
            pl.BlockSpec((t_blk, B, G), lambda t: (t, 0, 0)),  # xw block
            pl.BlockSpec((H, G), lambda t: (0, 0)),            # W_hh^T (resident)
            pl.BlockSpec((B, H), lambda t: (0, 0)),            # h0 (layer)
            pl.BlockSpec((B, H), lambda t: (0, 0)),            # c0 (layer)
        ],
        out_specs=[
            pl.BlockSpec((t_blk, B, H), lambda t: (t, 0, 0)),  # outputs (bf16)
            pl.BlockSpec((B, H), lambda t: (0, 0)),            # h_n (resident)
            pl.BlockSpec((B, H), lambda t: (0, 0)),            # c_n (resident)
        ],
        scratch_shapes=[pltpu.VMEM((B, H), jnp.float32),
                        pltpu.VMEM((B, H), jnp.float32)],
    )
    out_shapes = (jax.ShapeDtypeStruct((S_pad, B, H), jnp.bfloat16),
                  jax.ShapeDtypeStruct((B, H), jnp.float32),
                  jax.ShapeDtypeStruct((B, H), jnp.float32))
    out, h_n, c_n = pl.pallas_call(
        kernel,
        out_shape=out_shapes,
        grid_spec=grid_spec,
        compiler_params=pltpu.CompilerParams(
            dimension_semantics=("arbitrary",),        # sequential recurrence
            vmem_limit_bytes=vmem_limit),
        cost_estimate=cost,
    )(xw, whh_l, h0_l, c0_l)
    return out[:S], h_n, c_n


def rnn_model_forward(tokens, hidden, params, *, dec_dim):
    """is_train=False path of RNNModel_s.forward (dropout == identity)."""
    emb = jnp.take(params["emb"], tokens, axis=0)      # (S, B, E) f32
    x = emb.astype(jnp.bfloat16)                       # bf16 activation handoff
    h0, c0 = hidden
    S, B, _ = x.shape
    L, _, H = h0.shape
    G = 4 * H

    hs, cs = [], []
    for l in range(L):                                 # layer-major restructure
        n_in = x.shape[-1]
        # Hoisted input projection: one big "parallel" matmul per layer,
        # bias (b_ih + b_hh) folded in here; weights pre-padded at init.
        xw = pallas_linear(x.reshape(S * B, n_in),
                           params["wih_t"][l], params["bias"][l], G)
        xw = xw.reshape(S, B, G)
        # Serial recurrence: only h @ W_hh inside; emits bf16 hidden stream.
        x, h_l, c_l = lstm_layer(xw, h0[l], c0[l], params["whh_t"][l])
        hs.append(h_l)
        cs.append(c_l)
    h_n = jnp.stack(hs)
    c_n = jnp.stack(cs)

    # Decoder: tiled linear, vocab pre-padded to a lane-dense multiple of 128.
    decoded = pallas_linear(x.reshape(S * B, H),
                            params["w_dec_t"], params["b_dec"], dec_dim)
    decoded = decoded.reshape(S, B, dec_dim)
    return decoded[:, :, :-1], (h_n, c_n)


# ----------------------------------------------------------------------------
# Deterministic parameter init (mirrors RNNModel_s.__init__ shapes / init),
# pre-transposed / pre-padded / gate-reordered once here.
# ----------------------------------------------------------------------------
def init_params(key, ntoken, ninp, nhid, nlayers, pad_idx):
    assert ninp == nhid, "stacked per-layer weights assume ninp == nhid"
    V = ntoken + 1
    H = nhid
    G = 4 * H
    G_pad = _round_up(G, 128)
    V_pad = _round_up(V, 128)

    ks = jax.random.split(key, 6)
    initrange = 0.1
    emb = jax.random.uniform(ks[0], (V, ninp), jnp.float32, -initrange, initrange)
    emb = emb.at[pad_idx].set(0.0)                      # padding_idx row
    w_dec = jax.random.uniform(ks[1], (V, H), jnp.float32, -initrange, initrange)
    b_dec = jnp.zeros((V,), jnp.float32)
    stdv = 1.0 / (H ** 0.5)                             # PyTorch LSTM default
    wih = jax.random.uniform(ks[2], (nlayers, G, ninp), jnp.float32, -stdv, stdv)
    whh = jax.random.uniform(ks[3], (nlayers, G, H), jnp.float32, -stdv, stdv)
    bih = jax.random.uniform(ks[4], (nlayers, G), jnp.float32, -stdv, stdv)
    bhh = jax.random.uniform(ks[5], (nlayers, G), jnp.float32, -stdv, stdv)

    # Gate reorder (i, f, g, o) -> (i, f, o, g): sigmoid gates contiguous.
    perm = jnp.concatenate([jnp.arange(0, H), jnp.arange(H, 2 * H),
                            jnp.arange(3 * H, 4 * H), jnp.arange(2 * H, 3 * H)])
    wih = wih[:, perm, :]
    whh = whh[:, perm, :]
    bias = (bih + bhh)[:, perm]

    wih_t = jnp.transpose(wih, (0, 2, 1)).astype(jnp.bfloat16)   # (L, E, G)
    whh_t = jnp.transpose(whh, (0, 2, 1)).astype(jnp.bfloat16)   # (L, H, G)

    # Pre-pad ONCE (lane-dense output columns for the linear kernels).
    wih_p = jnp.pad(wih_t, ((0, 0), (0, 0), (0, G_pad - G)))
    bias_p = jnp.pad(bias, ((0, 0), (0, G_pad - G))).reshape(nlayers, 1, G_pad)
    w_dec_t = jnp.pad(jnp.transpose(w_dec).astype(jnp.bfloat16),
                      ((0, 0), (0, V_pad - V)))
    b_dec_p = jnp.pad(b_dec, (0, V_pad - V)).reshape(1, V_pad)

    return {
        "emb": emb,          # (V, E)        f32
        "wih_t": wih_p,      # (L, E, G_pad) bf16, gate order (i,f,o,g)
        "whh_t": whh_t,      # (L, H, G)     bf16, gate order (i,f,o,g)
        "bias": bias_p,      # (L, 1, G_pad) f32,  b_ih + b_hh
        "w_dec_t": w_dec_t,  # (H, V_pad)    bf16
        "b_dec": b_dec_p,    # (1, V_pad)    f32
    }


# ----------------------------------------------------------------------------
# Pure-JAX reference (time-major scan; mirrors the bf16-weight numerics and
# the (i,f,o,g) gate layout)
# ----------------------------------------------------------------------------
def forward_ref(tokens, hidden, params, *, dec_dim):
    emb = jnp.take(params["emb"], tokens, axis=0)
    h0, c0 = hidden
    L, _, H = h0.shape
    G = 4 * H
    wih = params["wih_t"][:, :, :G]
    whh = params["whh_t"]
    bias = params["bias"][:, 0, :G]

    def step(carry, x_t):
        h, c = carry
        hs, cs = [], []
        inp = x_t
        for l in range(L):
            gates = (jnp.dot(inp.astype(wih.dtype), wih[l],
                             preferred_element_type=jnp.float32)
                     + bias[l]
                     + jnp.dot(h[l].astype(whh.dtype), whh[l],
                               preferred_element_type=jnp.float32))
            sig = jax.nn.sigmoid(gates[:, :3 * H])
            i_g, f_g, o_g = sig[:, :H], sig[:, H:2 * H], sig[:, 2 * H:3 * H]
            g_g = jnp.tanh(gates[:, 3 * H:])
            cn = f_g * c[l] + i_g * g_g
            hn = o_g * jnp.tanh(cn)
            hs.append(hn)
            cs.append(cn)
            inp = hn
        return (jnp.stack(hs), jnp.stack(cs)), inp

    (h_n, c_n), out = lax.scan(step, (h0, c0), emb)
    S, B, _ = out.shape
    dec = (jnp.dot(out.reshape(S * B, H).astype(params["w_dec_t"].dtype),
                   params["w_dec_t"], preferred_element_type=jnp.float32)
           + params["b_dec"])
    dec = dec.reshape(S, B, -1)[:, :, :dec_dim]
    return dec[:, :, :-1], (h_n, c_n)


# ----------------------------------------------------------------------------
if __name__ == "__main__":
    S, B = 8, 2                 # seq_len, batch
    ntoken = 50                 # vocab (decoder output is ntoken+1 wide)
    ninp = nhid = 32
    nlayers = 2
    pad_idx = ntoken            # the extra (padding) token id

    key = jax.random.PRNGKey(0)
    k_par, k_tok = jax.random.split(key)
    params = init_params(k_par, ntoken, ninp, nhid, nlayers, pad_idx)

    tokens = jax.random.randint(k_tok, (S, B), 0, ntoken, dtype=jnp.int32)
    hidden = (jnp.zeros((nlayers, B, nhid), jnp.float32),   # init_hidden(B)
              jnp.zeros((nlayers, B, nhid), jnp.float32))

    fwd = jax.jit(functools.partial(rnn_model_forward, dec_dim=ntoken + 1))
    decoded, (h_n, c_n) = fwd(tokens, hidden, params)
    jax.block_until_ready(decoded)
    jax.block_until_ready(h_n)
    jax.block_until_ready(c_n)

    assert decoded.shape == (S, B, ntoken)
    assert h_n.shape == (nlayers, B, nhid) and c_n.shape == (nlayers, B, nhid)

    # Correctness vs pure-JAX reference.
    ref = jax.jit(functools.partial(forward_ref, dec_dim=ntoken + 1))
    ref_dec, (ref_h, ref_c) = ref(tokens, hidden, params)
    assert jnp.allclose(decoded, ref_dec, atol=2e-3, rtol=2e-3)
    assert jnp.allclose(h_n, ref_h, atol=2e-3, rtol=2e-3)
    assert jnp.allclose(c_n, ref_c, atol=2e-3, rtol=2e-3)

    print("KERNEL_OK")
</pallas_src>

<mosaic_0001>
module attributes {stable_mosaic.version = 11 : i64} {
  func.func @linear_kernel(%arg0: i32, %arg1: i32, %arg2: i32, %arg3: memref<16x32xbf16, #tpu.memory_space<vmem>>, %arg4: memref<32x128xbf16, #tpu.memory_space<vmem>>, %arg5: memref<1x128xf32, #tpu.memory_space<vmem>>, %arg6: memref<16x128xf32, #tpu.memory_space<vmem>>, %arg7: memref<16x128xf32, #tpu.memory_space<vmem>>) attributes {dimension_semantics = [#tpu.dimension_semantics<parallel>, #tpu.dimension_semantics<parallel>, #tpu.dimension_semantics<arbitrary>], iteration_bounds = array<i64: 1, 1, 1>, scalar_prefetch = 0 : i64, scratch_operands = 1 : i64, tpu.core_type = #tpu.core_type<tc>, window_params = [{transform_indices = @transform_0, window_bounds = array<i64: 16, 32>}, {transform_indices = @transform_1, window_bounds = array<i64: 32, 128>}, {transform_indices = @transform_2, window_bounds = array<i64: 1, 128>}, {transform_indices = @transform_3, window_bounds = array<i64: 16, 128>}]} {
    %c0_i32 = arith.constant 0 : i32
    %0 = arith.cmpi eq, %arg2, %c0_i32 : i32
    %1 = arith.extui %0 : i1 to i32
    %c0_i32_0 = arith.constant 0 : i32
    %2 = arith.cmpi ne, %1, %c0_i32_0 : i32
    scf.if %2 {
      %cst_10 = arith.constant 0.000000e+00 : f32
      %12 = vector.broadcast %cst_10 : f32 to vector<16x128xf32>
      %c0_11 = arith.constant 0 : index
      %c0_12 = arith.constant 0 : index
      %13 = vector.load %arg7[%c0_11, %c0_12] : memref<16x128xf32, #tpu.memory_space<vmem>>, vector<16x128xf32>
      tpu.vector_store %arg7[%c0_11, %c0_12], %12 {strides = array<i32>} : memref<16x128xf32, #tpu.memory_space<vmem>>, vector<16x128xf32>,
    } else {
    }
    %c0 = arith.constant 0 : index
    %c0_1 = arith.constant 0 : index
    %3 = vector.load %arg7[%c0, %c0_1] : memref<16x128xf32, #tpu.memory_space<vmem>>, vector<16x128xf32>
    %c0_2 = arith.constant 0 : index
    %c0_3 = arith.constant 0 : index
    %4 = vector.load %arg3[%c0_2, %c0_3] : memref<16x32xbf16, #tpu.memory_space<vmem>>, vector<16x32xbf16>
    %c0_4 = arith.constant 0 : index
    %c0_5 = arith.constant 0 : index
    %5 = vector.load %arg4[%c0_4, %c0_5] : memref<32x128xbf16, #tpu.memory_space<vmem>>, vector<32x128xbf16>
    %cst = arith.constant dense<0.000000e+00> : vector<16x128xf32>
    %6 = tpu.matmul %4, %5, %cst {dimension_numbers = #tpu.dot_dimension_numbers<[1], [0], [0], [1], [0, 0, 1, 1], [], []>} : vector<16x32xbf16>, vector<32x128xbf16>, vector<16x128xf32> -> vector<16x128xf32>
    %7 = arith.addf %3, %6 : vector<16x128xf32>
    %c0_6 = arith.constant 0 : index
    %c0_7 = arith.constant 0 : index
    %8 = vector.load %arg7[%c0_6, %c0_7] : memref<16x128xf32, #tpu.memory_space<vmem>>, vector<16x128xf32>
    tpu.vector_store %arg7[%c0_6, %c0_7], %7 {strides = array<i32>} : memref<16x128xf32, #tpu.memory_space<vmem>>, vector<16x128xf32>,
    %c0_i32_8 = arith.constant 0 : i32
    %9 = arith.cmpi eq, %arg2, %c0_i32_8 : i32
    %10 = arith.extui %9 : i1 to i32
    %c0_i32_9 = arith.constant 0 : i32
    %11 = arith.cmpi ne, %10, %c0_i32_9 : i32
    scf.if %11 {
      %c0_10 = arith.constant 0 : index
      %c0_11 = arith.constant 0 : index
      %12 = vector.load %arg7[%c0_10, %c0_11] : memref<16x128xf32, #tpu.memory_space<vmem>>, vector<16x128xf32>
      %c0_12 = arith.constant 0 : index
      %c0_13 = arith.constant 0 : index
      %13 = vector.load %arg5[%c0_12, %c0_13] : memref<1x128xf32, #tpu.memory_space<vmem>>, vector<1x128xf32>
      %14 = vector.broadcast %13 : vector<1x128xf32> to vector<16x128xf32>
      %15 = arith.addf %12, %14 : vector<16x128xf32>
      %c0_14 = arith.constant 0 : index
      %c0_15 = arith.constant 0 : index
      %16 = vector.load %arg6[%c0_14, %c0_15] : memref<16x128xf32, #tpu.memory_space<vmem>>, vector<16x128xf32>
      tpu.vector_store %arg6[%c0_14, %c0_15], %15 {strides = array<i32>} : memref<16x128xf32, #tpu.memory_space<vmem>>, vector<16x128xf32>,
    } else {
    }
    return
  }
  func.func @transform_0(%arg0: i32, %arg1: i32, %arg2: i32) -> (i32, i32) {
    %c0_i32 = arith.constant 0 : i32
    return %arg0, %arg2 : i32, i32
  }
  func.func @transform_1(%arg0: i32, %arg1: i32, %arg2: i32) -> (i32, i32) {
    %c0_i32 = arith.constant 0 : i32
    return %arg2, %arg1 : i32, i32
  }
  func.func @transform_2(%arg0: i32, %arg1: i32, %arg2: i32) -> (i32, i32) {
    %c0_i32 = arith.constant 0 : i32
    %c0_i32_0 = arith.constant 0 : i32
    return %c0_i32, %arg1 : i32, i32
  }
  func.func @transform_3(%arg0: i32, %arg1: i32, %arg2: i32) -> (i32, i32) {
    %c0_i32 = arith.constant 0 : i32
    return %arg0, %arg1 : i32, i32
  }
}

module attributes {stable_mosaic.version = 11 : i64} {
  func.func @linear_kernel(%arg0: i32, %arg1: i32, %arg2: i32, %arg3: memref<16x32xbf16, #tpu.memory_space<vmem>>, %arg4: memref<32x128xbf16, #tpu.memory_space<vmem>>, %arg5: memref<1x128xf32, #tpu.memory_space<vmem>>, %arg6: memref<16x128xf32, #tpu.memory_space<vmem>>, %arg7: memref<16x128xf32, #tpu.memory_space<vmem>>) attributes {dimension_semantics = [#tpu.dimension_semantics<parallel>, #tpu.dimension_semantics<parallel>, #tpu.dimension_semantics<arbitrary>], iteration_bounds = array<i64: 1, 1, 1>, scalar_prefetch = 0 : i64, scratch_operands = 1 : i64, tpu.core_type = #tpu.core_type<tc>, window_params = [{transform_indices = @transform_0, window_bounds = array<i64: 16, 32>}, {transform_indices = @transform_1, window_bounds = array<i64: 32, 128>}, {transform_indices = @transform_2, window_bounds = array<i64: 1, 128>}, {transform_indices = @transform_3, window_bounds = array<i64: 16, 128>}]} {
    %c0_i32 = arith.constant 0 : i32
    %0 = arith.cmpi eq, %arg2, %c0_i32 : i32
    %1 = arith.extui %0 : i1 to i32
    %c0_i32_0 = arith.constant 0 : i32
    %2 = arith.cmpi ne, %1, %c0_i32_0 : i32
    scf.if %2 {
      %cst_10 = arith.constant 0.000000e+00 : f32
      %12 = vector.broadcast %cst_10 : f32 to vector<16x128xf32>
      %c0_11 = arith.constant 0 : index
      %c0_12 = arith.constant 0 : index
      %13 = vector.load %arg7[%c0_11, %c0_12] : memref<16x128xf32, #tpu.memory_space<vmem>>, vector<16x128xf32>
      tpu.vector_store %arg7[%c0_11, %c0_12], %12 {strides = array<i32>} : memref<16x128xf32, #tpu.memory_space<vmem>>, vector<16x128xf32>,
    } else {
    }
    %c0 = arith.constant 0 : index
    %c0_1 = arith.constant 0 : index
    %3 = vector.load %arg7[%c0, %c0_1] : memref<16x128xf32, #tpu.memory_space<vmem>>, vector<16x128xf32>
    %c0_2 = arith.constant 0 : index
    %c0_3 = arith.constant 0 : index
    %4 = vector.load %arg3[%c0_2, %c0_3] : memref<16x32xbf16, #tpu.memory_space<vmem>>, vector<16x32xbf16>
    %c0_4 = arith.constant 0 : index
    %c0_5 = arith.constant 0 : index
    %5 = vector.load %arg4[%c0_4, %c0_5] : memref<32x128xbf16, #tpu.memory_space<vmem>>, vector<32x128xbf16>
    %cst = arith.constant dense<0.000000e+00> : vector<16x128xf32>
    %6 = tpu.matmul %4, %5, %cst {dimension_numbers = #tpu.dot_dimension_numbers<[1], [0], [0], [1], [0, 0, 1, 1], [], []>} : vector<16x32xbf16>, vector<32x128xbf16>, vector<16x128xf32> -> vector<16x128xf32>
    %7 = arith.addf %3, %6 : vector<16x128xf32>
    %c0_6 = arith.constant 0 : index
    %c0_7 = arith.constant 0 : index
    %8 = vector.load %arg7[%c0_6, %c0_7] : memref<16x128xf32, #tpu.memory_space<vmem>>, vector<16x128xf32>
    tpu.vector_store %arg7[%c0_6, %c0_7], %7 {strides = array<i32>} : memref<16x128xf32, #tpu.memory_space<vmem>>, vector<16x128xf32>,
    %c0_i32_8 = arith.constant 0 : i32
    %9 = arith.cmpi eq, %arg2, %c0_i32_8 : i32
    %10 = arith.extui %9 : i1 to i32
    %c0_i32_9 = arith.constant 0 : i32
    %11 = arith.cmpi ne, %10, %c0_i32_9 : i32
    scf.if %11 {
      %c0_10 = arith.constant 0 : index
      %c0_11 = arith.constant 0 : index
      %12 = vector.load %arg7[%c0_10, %c0_11] : memref<16x128xf32, #tpu.memory_space<vmem>>, vector<16x128xf32>
      %c0_12 = arith.constant 0 : index
      %c0_13 = arith.constant 0 : index
      %13 = vector.load %arg5[%c0_12, %c0_13] : memref<1x128xf32, #tpu.memory_space<vmem>>, vector<1x128xf32>
      %14 = vector.broadcast %13 : vector<1x128xf32> to vector<16x128xf32>
      %15 = arith.addf %12, %14 : vector<16x128xf32>
      %c0_14 = arith.constant 0 : index
      %c0_15 = arith.constant 0 : index
      %16 = vector.load %arg6[%c0_14, %c0_15] : memref<16x128xf32, #tpu.memory_space<vmem>>, vector<16x128xf32>
      tpu.vector_store %arg6[%c0_14, %c0_15], %15 {strides = array<i32>} : memref<16x128xf32, #tpu.memory_space<vmem>>, vector<16x128xf32>,
    } else {
    }
    return
  }
  func.func @transform_0(%arg0: i32, %arg1: i32, %arg2: i32) -> (i32, i32) {
    %c0_i32 = arith.constant 0 : i32
    return %arg0, %arg2 : i32, i32
  }
  func.func @transform_1(%arg0: i32, %arg1: i32, %arg2: i32) -> (i32, i32) {
    %c0_i32 = arith.constant 0 : i32
    return %arg2, %arg1 : i32, i32
  }
  func.func @transform_2(%arg0: i32, %arg1: i32, %arg2: i32) -> (i32, i32) {
    %c0_i32 = arith.constant 0 : i32
    %c0_i32_0 = arith.constant 0 : i32
    return %c0_i32, %arg1 : i32, i32
  }
  func.func @transform_3(%arg0: i32, %arg1: i32, %arg2: i32) -> (i32, i32) {
    %c0_i32 = arith.constant 0 : i32
    return %arg0, %arg1 : i32, i32
  }
}

module attributes {stable_mosaic.version = 11 : i64} {
  func.func @lstm_layer_kernel(%arg0: i32, %arg1: memref<8x2x128xf32, #tpu.memory_space<vmem>>, %arg2: memref<32x128xbf16, #tpu.memory_space<vmem>>, %arg3: memref<2x32xf32, #tpu.memory_space<vmem>>, %arg4: memref<2x32xf32, #tpu.memory_space<vmem>>, %arg5: memref<8x2x32xbf16, #tpu.memory_space<vmem>>, %arg6: memref<2x32xf32, #tpu.memory_space<vmem>>, %arg7: memref<2x32xf32, #tpu.memory_space<vmem>>, %arg8: memref<2x32xf32, #tpu.memory_space<vmem>>, %arg9: memref<2x32xf32, #tpu.memory_space<vmem>>) attributes {dimension_semantics = [#tpu.dimension_semantics<arbitrary>], iteration_bounds = array<i64: 1>, scalar_prefetch = 0 : i64, scratch_operands = 2 : i64, tpu.core_type = #tpu.core_type<tc>, window_params = [{transform_indices = @transform_0, window_bounds = array<i64: 8, 2, 128>}, {pipeline_mode = #tpu.pipeline_mode<synchronous>, transform_indices = @transform_1, window_bounds = array<i64: 32, 128>}, {pipeline_mode = #tpu.pipeline_mode<synchronous>, transform_indices = @transform_2, window_bounds = array<i64: 2, 32>}, {pipeline_mode = #tpu.pipeline_mode<synchronous>, transform_indices = @transform_3, window_bounds = array<i64: 2, 32>}, {transform_indices = @transform_4, window_bounds = array<i64: 8, 2, 32>}, {pipeline_mode = #tpu.pipeline_mode<synchronous>, transform_indices = @transform_5, window_bounds = array<i64: 2, 32>}, {pipeline_mode = #tpu.pipeline_mode<synchronous>, transform_indices = @transform_6, window_bounds = array<i64: 2, 32>}]} {
    %c0_i32 = arith.constant 0 : i32
    %0 = arith.cmpi eq, %arg0, %c0_i32 : i32
    %1 = arith.extui %0 : i1 to i32
    %c0_i32_0 = arith.constant 0 : i32
    %2 = arith.cmpi ne, %1, %c0_i32_0 : i32
    scf.if %2 {
      %c0_68 = arith.constant 0 : index
      %c0_69 = arith.constant 0 : index
      %211 = vector.load %arg3[%c0_68, %c0_69] : memref<2x32xf32, #tpu.memory_space<vmem>>, vector<2x32xf32>
      %c0_70 = arith.constant 0 : index
      %c0_71 = arith.constant 0 : index
      %212 = vector.load %arg8[%c0_70, %c0_71] : memref<2x32xf32, #tpu.memory_space<vmem>>, vector<2x32xf32>
      tpu.vector_store %arg8[%c0_70, %c0_71], %211 {strides = array<i32>} : memref<2x32xf32, #tpu.memory_space<vmem>>, vector<2x32xf32>,
      %c0_72 = arith.constant 0 : index
      %c0_73 = arith.constant 0 : index
      %213 = vector.load %arg4[%c0_72, %c0_73] : memref<2x32xf32, #tpu.memory_space<vmem>>, vector<2x32xf32>
      %c0_74 = arith.constant 0 : index
      %c0_75 = arith.constant 0 : index
      %214 = vector.load %arg9[%c0_74, %c0_75] : memref<2x32xf32, #tpu.memory_space<vmem>>, vector<2x32xf32>
      tpu.vector_store %arg9[%c0_74, %c0_75], %213 {strides = array<i32>} : memref<2x32xf32, #tpu.memory_space<vmem>>, vector<2x32xf32>,
    } else {
    }
    %c0 = arith.constant 0 : index
    %c0_1 = arith.constant 0 : index
    %3 = vector.load %arg2[%c0, %c0_1] : memref<32x128xbf16, #tpu.memory_space<vmem>>, vector<32x128xbf16>
    %c0_2 = arith.constant 0 : index
    %c0_3 = arith.constant 0 : index
    %4 = vector.load %arg8[%c0_2, %c0_3] : memref<2x32xf32, #tpu.memory_space<vmem>>, vector<2x32xf32>
    %c0_4 = arith.constant 0 : index
    %c0_5 = arith.constant 0 : index
    %5 = vector.load %arg9[%c0_4, %c0_5] : memref<2x32xf32, #tpu.memory_space<vmem>>, vector<2x32xf32>
    %c0_6 = arith.constant 0 : index
    %c0_7 = arith.constant 0 : index
    %c0_8 = arith.constant 0 : index
    %6 = vector.load %arg1[%c0_6, %c0_7, %c0_8] : memref<8x2x128xf32, #tpu.memory_space<vmem>>, vector<1x2x128xf32>
    %7 = vector.shape_cast %6 : vector<1x2x128xf32> to vector<2x128xf32>
    %8 = arith.truncf %4 : vector<2x32xf32> to vector<2x32xbf16>
    %cst = arith.constant dense<0.000000e+00> : vector<2x128xf32>
    %9 = tpu.matmul %8, %3, %cst {dimension_numbers = #tpu.dot_dimension_numbers<[1], [0], [0], [1], [0, 0, 1, 1], [], []>} : vector<2x32xbf16>, vector<32x128xbf16>, vector<2x128xf32> -> vector<2x128xf32>
    %10 = arith.addf %7, %9 : vector<2x128xf32>
    %11 = vector.extract_strided_slice %10 {offsets = [0, 0], sizes = [2, 96], strides = [1, 1]} : vector<2x128xf32> to vector<2x96xf32>
    %12 = arith.negf %11 : vector<2x96xf32>
    %13 = math.exp %12 : vector<2x96xf32>
    %cst_9 = arith.constant 1.000000e+00 : f32
    %14 = vector.broadcast %cst_9 : f32 to vector<2x96xf32>
    %15 = arith.addf %14, %13 : vector<2x96xf32>
    %16 = arith.divf %14, %15 : vector<2x96xf32>
    %17 = vector.extract_strided_slice %16 {offsets = [0, 0], sizes = [2, 32], strides = [1, 1]} : vector<2x96xf32> to vector<2x32xf32>
    %18 = vector.extract_strided_slice %16 {offsets = [0, 32], sizes = [2, 32], strides = [1, 1]} : vector<2x96xf32> to vector<2x32xf32>
    %19 = vector.extract_strided_slice %16 {offsets = [0, 64], sizes = [2, 32], strides = [1, 1]} : vector<2x96xf32> to vector<2x32xf32>
    %20 = vector.extract_strided_slice %10 {offsets = [0, 96], sizes = [2, 32], strides = [1, 1]} : vector<2x128xf32> to vector<2x32xf32>
    %21 = math.tanh %20 : vector<2x32xf32>
    %22 = arith.mulf %18, %5 : vector<2x32xf32>
    %23 = arith.mulf %17, %21 : vector<2x32xf32>
    %24 = arith.addf %22, %23 : vector<2x32xf32>
    %25 = math.tanh %24 : vector<2x32xf32>
    %26 = arith.mulf %19, %25 : vector<2x32xf32>
    %27 = arith.truncf %26 : vector<2x32xf32> to vector<2x32xbf16>
    %c0_10 = arith.constant 0 : index
    %c0_11 = arith.constant 0 : index
    %c0_12 = arith.constant 0 : index
    %28 = vector.load %arg5[%c0_10, %c0_11, %c0_12] : memref<8x2x32xbf16, #tpu.memory_space<vmem>>, vector<1x2x32xbf16>
    %29 = vector.shape_cast %28 : vector<1x2x32xbf16> to vector<2x32xbf16>
    %30 = vector.shape_cast %27 : vector<2x32xbf16> to vector<1x2x32xbf16>
    tpu.vector_store %arg5[%c0_10, %c0_11, %c0_12], %30 {strides = array<i32>} : memref<8x2x32xbf16, #tpu.memory_space<vmem>>, vector<1x2x32xbf16>,
    %c1 = arith.constant 1 : index
    %c0_13 = arith.constant 0 : index
    %c0_14 = arith.constant 0 : index
    %31 = vector.load %arg1[%c1, %c0_13, %c0_14] : memref<8x2x128xf32, #tpu.memory_space<vmem>>, vector<1x2x128xf32>
    %32 = vector.shape_cast %31 : vector<1x2x128xf32> to vector<2x128xf32>
    %33 = arith.truncf %26 : vector<2x32xf32> to vector<2x32xbf16>
    %cst_15 = arith.constant dense<0.000000e+00> : vector<2x128xf32>
    %34 = tpu.matmul %33, %3, %cst_15 {dimension_numbers = #tpu.dot_dimension_numbers<[1], [0], [0], [1], [0, 0, 1, 1], [], []>} : vector<2x32xbf16>, vector<32x128xbf16>, vector<2x128xf32> -> vector<2x128xf32>
    %35 = arith.addf %32, %34 : vector<2x128xf32>
    %36 = vector.extract_strided_slice %35 {offsets = [0, 0], sizes = [2, 96], strides = [1, 1]} : vector<2x128xf32> to vector<2x96xf32>
    %37 = arith.negf %36 : vector<2x96xf32>
    %38 = math.exp %37 : vector<2x96xf32>
    %cst_16 = arith.constant 1.000000e+00 : f32
    %39 = vector.broadcast %cst_16 : f32 to vector<2x96xf32>
    %40 = arith.addf %39, %38 : vector<2x96xf32>
    %41 = arith.divf %39, %40 : vector<2x96xf32>
    %42 = vector.extract_strided_slice %41 {offsets = [0, 0], sizes = [2, 32], strides = [1, 1]} : vector<2x96xf32> to vector<2x32xf32>
    %43 = vector.extract_strided_slice %41 {offsets = [0, 32], sizes = [2, 32], strides = [1, 1]} : vector<2x96xf32> to vector<2x32xf32>
    %44 = vector.extract_strided_slice %41 {offsets = [0, 64], sizes = [2, 32], strides = [1, 1]} : vector<2x96xf32> to vector<2x32xf32>
    %45 = vector.extract_strided_slice %35 {offsets = [0, 96], sizes = [2, 32], strides = [1, 1]} : vector<2x128xf32> to vector<2x32xf32>
    %46 = math.tanh %45 : vector<2x32xf32>
    %47 = arith.mulf %43, %24 : vector<2x32xf32>
    %48 = arith.mulf %42, %46 : vector<2x32xf32>
    %49 = arith.addf %47, %48 : vector<2x32xf32>
    %50 = math.tanh %49 : vector<2x32xf32>
    %51 = arith.mulf %44, %50 : vector<2x32xf32>
    %52 = arith.truncf %51 : vector<2x32xf32> to vector<2x32xbf16>
    %c1_17 = arith.constant 1 : index
    %c0_18 = arith.constant 0 : index
    %c0_19 = arith.constant 0 : index
    %53 = vector.load %arg5[%c1_17, %c0_18, %c0_19] : memref<8x2x32xbf16, #tpu.memory_space<vmem>>, vector<1x2x32xbf16>
    %54 = vector.shape_cast %53 : vector<1x2x32xbf16> to vector<2x32xbf16>
    %55 = vector.shape_cast %52 : vector<2x32xbf16> to vector<1x2x32xbf16>
    tpu.vector_store %arg5[%c1_17, %c0_18, %c0_19], %55 {strides = array<i32>} : memref<8x2x32xbf16, #tpu.memory_space<vmem>>, vector<1x2x32xbf16>,
    %c2 = arith.constant 2 : index
    %c0_20 = arith.constant 0 : index
    %c0_21 = arith.constant 0 : index
    %56 = vector.load %arg1[%c2, %c0_20, %c0_21] : memref<8x2x128xf32, #tpu.memory_space<vmem>>, vector<1x2x128xf32>
    %57 = vector.shape_cast %56 : vector<1x2x128xf32> to vector<2x128xf32>
    %58 = arith.truncf %51 : vector<2x32xf32> to vector<2x32xbf16>
    %cst_22 = arith.constant dense<0.000000e+00> : vector<2x128xf32>
    %59 = tpu.matmul %58, %3, %cst_22 {dimension_numbers = #tpu.dot_dimension_numbers<[1], [0], [0], [1], [0, 0, 1, 1], [], []>} : vector<2x32xbf16>, vector<32x128xbf16>, vector<2x128xf32> -> vector<2x128xf32>
    %60 = arith.addf %57, %59 : vector<2x128xf32>
    %61 = vector.extract_strided_slice %60 {offsets = [0, 0], sizes = [2, 96], strides = [1, 1]} : vector<2x128xf32> to vector<2x96xf32>
    %62 = arith.negf %61 : vector<2x96xf32>
    %63 = math.exp %62 : vector<2x96xf32>
    %cst_23 = arith.constant 1.000000e+00 : f32
    %64 = vector.broadcast %cst_23 : f32 to vector<2x96xf32>
    %65 = arith.addf %64, %63 : vector<2x96xf32>
    %66 = arith.divf %64, %65 : vector<2x96xf32>
    %67 = vector.extract_strided_slice %66 {offsets = [0, 0], sizes = [2, 32], strides = [1, 1]} : vector<2x96xf32> to vector<2x32xf32>
    %68 = vector.extract_strided_slice %66 {offsets = [0, 32], sizes = [2, 32], strides = [1, 1]} : vector<2x96xf32> to vector<2x32xf32>
    %69 = vector.extract_strided_slice %66 {offsets = [0, 64], sizes = [2, 32], strides = [1, 1]} : vector<2x96xf32> to vector<2x32xf32>
    %70 = vector.extract_strided_slice %60 {offsets = [0, 96], sizes = [2, 32], strides = [1, 1]} : vector<2x128xf32> to vector<2x32xf32>
    %71 = math.tanh %70 : vector<2x32xf32>
    %72 = arith.mulf %68, %49 : vector<2x32xf32>
    %73 = arith.mulf %67, %71 : vector<2x32xf32>
    %74 = arith.addf %72, %73 : vector<2x32xf32>
    %75 = math.tanh %74 : vector<2x32xf32>
    %76 = arith.mulf %69, %75 : vector<2x32xf32>
    %77 = arith.truncf %76 : vector<2x32xf32> to vector<2x32xbf16>
    %c2_24 = arith.constant 2 : index
    %c0_25 = arith.constant 0 : index
    %c0_26 = arith.constant 0 : index
    %78 = vector.load %arg5[%c2_24, %c0_25, %c0_26] : memref<8x2x32xbf16, #tpu.memory_space<vmem>>, vector<1x2x32xbf16>
    %79 = vector.shape_cast %78 : vector<1x2x32xbf16> to vector<2x32xbf16>
    %80 = vector.shape_cast %77 : vector<2x32xbf16> to vector<1x2x32xbf16>
    tpu.vector_store %arg5[%c2_24, %c0_25, %c0_26], %80 {strides = array<i32>} : memref<8x2x32xbf16, #tpu.memory_space<vmem>>, vector<1x2x32xbf16>,
    %c3 = arith.constant 3 : index
    %c0_27 = arith.constant 0 : index
    %c0_28 = arith.constant 0 : index
    %81 = vector.load %arg1[%c3, %c0_27, %c0_28] : memref<8x2x128xf32, #tpu.memory_space<vmem>>, vector<1x2x128xf32>
    %82 = vector.shape_cast %81 : vector<1x2x128xf32> to vector<2x128xf32>
    %83 = arith.truncf %76 : vector<2x32xf32> to vector<2x32xbf16>
    %cst_29 = arith.constant dense<0.000000e+00> : vector<2x128xf32>
    %84 = tpu.matmul %83, %3, %cst_29 {dimension_numbers = #tpu.dot_dimension_numbers<[1], [0], [0], [1], [0, 0, 1, 1], [], []>} : vector<2x32xbf16>, vector<32x128xbf16>, vector<2x128xf32> -> vector<2x128xf32>
    %85 = arith.addf %82, %84 : vector<2x128xf32>
    %86 = vector.extract_strided_slice %85 {offsets = [0, 0], sizes = [2, 96], strides = [1, 1]} : vector<2x128xf32> to vector<2x96xf32>
    %87 = arith.negf %86 : vector<2x96xf32>
    %88 = math.exp %87 : vector<2x96xf32>
    %cst_30 = arith.constant 1.000000e+00 : f32
    %89 = vector.broadcast %cst_30 : f32 to vector<2x96xf32>
    %90 = arith.addf %89, %88 : vector<2x96xf32>
    %91 = arith.divf %89, %90 : vector<2x96xf32>
    %92 = vector.extract_strided_slice %91 {offsets = [0, 0], sizes = [2, 32], strides = [1, 1]} : vector<2x96xf32> to vector<2x32xf32>
    %93 = vector.extract_strided_slice %91 {offsets = [0, 32], sizes = [2, 32], strides = [1, 1]} : vector<2x96xf32> to vector<2x32xf32>
    %94 = vector.extract_strided_slice %91 {offsets = [0, 64], sizes = [2, 32], strides = [1, 1]} : vector<2x96xf32> to vector<2x32xf32>
    %95 = vector.extract_strided_slice %85 {offsets = [0, 96], sizes = [2, 32], strides = [1, 1]} : vector<2x128xf32> to vector<2x32xf32>
    %96 = math.tanh %95 : vector<2x32xf32>
    %97 = arith.mulf %93, %74 : vector<2x32xf32>
    %98 = arith.mulf %92, %96 : vector<2x32xf32>
    %99 = arith.addf %97, %98 : vector<2x32xf32>
    %100 = math.tanh %99 : vector<2x32xf32>
    %101 = arith.mulf %94, %100 : vector<2x32xf32>
    %102 = arith.truncf %101 : vector<2x32xf32> to vector<2x32xbf16>
    %c3_31 = arith.constant 3 : index
    %c0_32 = arith.constant 0 : index
    %c0_33 = arith.constant 0 : index
    %103 = vector.load %arg5[%c3_31, %c0_32, %c0_33] : memref<8x2x32xbf16, #tpu.memory_space<vmem>>, vector<1x2x32xbf16>
    %104 = vector.shape_cast %103 : vector<1x2x32xbf16> to vector<2x32xbf16>
    %105 = vector.shape_cast %102 : vector<2x32xbf16> to vector<1x2x32xbf16>
    tpu.vector_store %arg5[%c3_31, %c0_32, %c0_33], %105 {strides = array<i32>} : memref<8x2x32xbf16, #tpu.memory_space<vmem>>, vector<1x2x32xbf16>,
    %c4 = arith.constant 4 : index
    %c0_34 = arith.constant 0 : index
    %c0_35 = arith.constant 0 : index
    %106 = vector.load %arg1[%c4, %c0_34, %c0_35] : memref<8x2x128xf32, #tpu.memory_space<vmem>>, vector<1x2x128xf32>
    %107 = vector.shape_cast %106 : vector<1x2x128xf32> to vector<2x128xf32>
    %108 = arith.truncf %101 : vector<2x32xf32> to vector<2x32xbf16>
    %cst_36 = arith.constant dense<0.000000e+00> : vector<2x128xf32>
    %109 = tpu.matmul %108, %3, %cst_36 {dimension_numbers = #tpu.dot_dimension_numbers<[1], [0], [0], [1], [0, 0, 1, 1], [], []>} : vector<2x32xbf16>, vector<32x128xbf16>, vector<2x128xf32> -> vector<2x128xf32>
    %110 = arith.addf %107, %109 : vector<2x128xf32>
    %111 = vector.extract_strided_slice %110 {offsets = [0, 0], sizes = [2, 96], strides = [1, 1]} : vector<2x128xf32> to vector<2x96xf32>
    %112 = arith.negf %111 : vector<2x96xf32>
    %113 = math.exp %112 : vector<2x96xf32>
    %cst_37 = arith.constant 1.000000e+00 : f32
    %114 = vector.broadcast %cst_37 : f32 to vector<2x96xf32>
    %115 = arith.addf %114, %113 : vector<2x96xf32>
    %116 = arith.divf %114, %115 : vector<2x96xf32>
    %117 = vector.extract_strided_slice %116 {offsets = [0, 0], sizes = [2, 32], strides = [1, 1]} : vector<2x96xf32> to vector<2x32xf32>
    %118 = vector.extract_strided_slice %116 {offsets = [0, 32], sizes = [2, 32], strides = [1, 1]} : vector<2x96xf32> to vector<2x32xf32>
    %119 = vector.extract_strided_slice %116 {offsets = [0, 64], sizes = [2, 32], strides = [1, 1]} : vector<2x96xf32> to vector<2x32xf32>
    %120 = vector.extract_strided_slice %110 {offsets = [0, 96], sizes = [2, 32], strides = [1, 1]} : vector<2x128xf32> to vector<2x32xf32>
    %121 = math.tanh %120 : vector<2x32xf32>
    %122 = arith.mulf %118, %99 : vector<2x32xf32>
    %123 = arith.mulf %117, %121 : vector<2x32xf32>
    %124 = arith.addf %122, %123 : vector<2x32xf32>
    %125 = math.tanh %124 : vector<2x32xf32>
    %126 = arith.mulf %119, %125 : vector<2x32xf32>
    %127 = arith.truncf %126 : vector<2x32xf32> to vector<2x32xbf16>
    %c4_38 = arith.constant 4 : index
    %c0_39 = arith.constant 0 : index
    %c0_40 = arith.constant 0 : index
    %128 = vector.load %arg5[%c4_38, %c0_39, %c0_40] : memref<8x2x32xbf16, #tpu.memory_space<vmem>>, vector<1x2x32xbf16>
    %129 = vector.shape_cast %128 : vector<1x2x32xbf16> to vector<2x32xbf16>
    %130 = vector.shape_cast %127 : vector<2x32xbf16> to vector<1x2x32xbf16>
    tpu.vector_store %arg5[%c4_38, %c0_39, %c0_40], %130 {strides = array<i32>} : memref<8x2x32xbf16, #tpu.memory_space<vmem>>, vector<1x2x32xbf16>,
    %c5 = arith.constant 5 : index
    %c0_41 = arith.constant 0 : index
    %c0_42 = arith.constant 0 : index
    %131 = vector.load %arg1[%c5, %c0_41, %c0_42] : memref<8x2x128xf32, #tpu.memory_space<vmem>>, vector<1x2x128xf32>
    %132 = vector.shape_cast %131 : vector<1x2x128xf32> to vector<2x128xf32>
    %133 = arith.truncf %126 : vector<2x32xf32> to vector<2x32xbf16>
    %cst_43 = arith.constant dense<0.000000e+00> : vector<2x128xf32>
    %134 = tpu.matmul %133, %3, %cst_43 {dimension_numbers = #tpu.dot_dimension_numbers<[1], [0], [0], [1], [0, 0, 1, 1], [], []>} : vector<2x32xbf16>, vector<32x128xbf16>, vector<2x128xf32> -> vector<2x128xf32>
    %135 = arith.addf %132, %134 : vector<2x128xf32>
    %136 = vector.extract_strided_slice %135 {offsets = [0, 0], sizes = [2, 96], strides = [1, 1]} : vector<2x128xf32> to vector<2x96xf32>
    %137 = arith.negf %136 : vector<2x96xf32>
    %138 = math.exp %137 : vector<2x96xf32>
    %cst_44 = arith.constant 1.000000e+00 : f32
    %139 = vector.broadcast %cst_44 : f32 to vector<2x96xf32>
    %140 = arith.addf %139, %138 : vector<2x96xf32>
    %141 = arith.divf %139, %140 : vector<2x96xf32>
    %142 = vector.extract_strided_slice %141 {offsets = [0, 0], sizes = [2, 32], strides = [1, 1]} : vector<2x96xf32> to vector<2x32xf32>
    %143 = vector.extract_strided_slice %141 {offsets = [0, 32], sizes = [2, 32], strides = [1, 1]} : vector<2x96xf32> to vector<2x32xf32>
    %144 = vector.extract_strided_slice %141 {offsets = [0, 64], sizes = [2, 32], strides = [1, 1]} : vector<2x96xf32> to vector<2x32xf32>
    %145 = vector.extract_strided_slice %135 {offsets = [0, 96], sizes = [2, 32], strides = [1, 1]} : vector<2x128xf32> to vector<2x32xf32>
    %146 = math.tanh %145 : vector<2x32xf32>
    %147 = arith.mulf %143, %124 : vector<2x32xf32>
    %148 = arith.mulf %142, %146 : vector<2x32xf32>
    %149 = arith.addf %147, %148 : vector<2x32xf32>
    %150 = math.tanh %149 : vector<2x32xf32>
    %151 = arith.mulf %144, %150 : vector<2x32xf32>
    %152 = arith.truncf %151 : vector<2x32xf32> to vector<2x32xbf16>
    %c5_45 = arith.constant 5 : index
    %c0_46 = arith.constant 0 : index
    %c0_47 = arith.constant 0 : index
    %153 = vector.load %arg5[%c5_45, %c0_46, %c0_47] : memref<8x2x32xbf16, #tpu.memory_space<vmem>>, vector<1x2x32xbf16>
    %154 = vector.shape_cast %153 : vector<1x2x32xbf16> to vector<2x32xbf16>
    %155 = vector.shape_cast %152 : vector<2x32xbf16> to vector<1x2x32xbf16>
    tpu.vector_store %arg5[%c5_45, %c0_46, %c0_47], %155 {strides = array<i32>} : memref<8x2x32xbf16, #tpu.memory_space<vmem>>, vector<1x2x32xbf16>,
    %c6 = arith.constant 6 : index
    %c0_48 = arith.constant 0 : index
    %c0_49 = arith.constant 0 : index
    %156 = vector.load %arg1[%c6, %c0_48, %c0_49] : memref<8x2x128xf32, #tpu.memory_space<vmem>>, vector<1x2x128xf32>
    %157 = vector.shape_cast %156 : vector<1x2x128xf32> to vector<2x128xf32>
    %158 = arith.truncf %151 : vector<2x32xf32> to vector<2x32xbf16>
    %cst_50 = arith.constant dense<0.000000e+00> : vector<2x128xf32>
    %159 = tpu.matmul %158, %3, %cst_50 {dimension_numbers = #tpu.dot_dimension_numbers<[1], [0], [0], [1], [0, 0, 1, 1], [], []>} : vector<2x32xbf16>, vector<32x128xbf16>, vector<2x128xf32> -> vector<2x128xf32>
    %160 = arith.addf %157, %159 : vector<2x128xf32>
    %161 = vector.extract_strided_slice %160 {offsets = [0, 0], sizes = [2, 96], strides = [1, 1]} : vector<2x128xf32> to vector<2x96xf32>
    %162 = arith.negf %161 : vector<2x96xf32>
    %163 = math.exp %162 : vector<2x96xf32>
    %cst_51 = arith.constant 1.000000e+00 : f32
    %164 = vector.broadcast %cst_51 : f32 to vector<2x96xf32>
    %165 = arith.addf %164, %163 : vector<2x96xf32>
    %166 = arith.divf %164, %165 : vector<2x96xf32>
    %167 = vector.extract_strided_slice %166 {offsets = [0, 0], sizes = [2, 32], strides = [1, 1]} : vector<2x96xf32> to vector<2x32xf32>
    %168 = vector.extract_strided_slice %166 {offsets = [0, 32], sizes = [2, 32], strides = [1, 1]} : vector<2x96xf32> to vector<2x32xf32>
    %169 = vector.extract_strided_slice %166 {offsets = [0, 64], sizes = [2, 32], strides = [1, 1]} : vector<2x96xf32> to vector<2x32xf32>
    %170 = vector.extract_strided_slice %160 {offsets = [0, 96], sizes = [2, 32], strides = [1, 1]} : vector<2x128xf32> to vector<2x32xf32>
    %171 = math.tanh %170 : vector<2x32xf32>
    %172 = arith.mulf %168, %149 : vector<2x32xf32>
    %173 = arith.mulf %167, %171 : vector<2x32xf32>
    %174 = arith.addf %172, %173 : vector<2x32xf32>
    %175 = math.tanh %174 : vector<2x32xf32>
    %176 = arith.mulf %169, %175 : vector<2x32xf32>
    %177 = arith.truncf %176 : vector<2x32xf32> to vector<2x32xbf16>
    %c6_52 = arith.constant 6 : index
    %c0_53 = arith.constant 0 : index
    %c0_54 = arith.constant 0 : index
    %178 = vector.load %arg5[%c6_52, %c0_53, %c0_54] : memref<8x2x32xbf16, #tpu.memory_space<vmem>>, vector<1x2x32xbf16>
    %179 = vector.shape_cast %178 : vector<1x2x32xbf16> to vector<2x32xbf16>
    %180 = vector.shape_cast %177 : vector<2x32xbf16> to vector<1x2x32xbf16>
    tpu.vector_store %arg5[%c6_52, %c0_53, %c0_54], %180 {strides = array<i32>} : memref<8x2x32xbf16, #tpu.memory_space<vmem>>, vector<1x2x32xbf16>,
    %c7 = arith.constant 7 : index
    %c0_55 = arith.constant 0 : index
    %c0_56 = arith.constant 0 : index
    %181 = vector.load %arg1[%c7, %c0_55, %c0_56] : memref<8x2x128xf32, #tpu.memory_space<vmem>>, vector<1x2x128xf32>
    %182 = vector.shape_cast %181 : vector<1x2x128xf32> to vector<2x128xf32>
    %183 = arith.truncf %176 : vector<2x32xf32> to vector<2x32xbf16>
    %cst_57 = arith.constant dense<0.000000e+00> : vector<2x128xf32>
    %184 = tpu.matmul %183, %3, %cst_57 {dimension_numbers = #tpu.dot_dimension_numbers<[1], [0], [0], [1], [0, 0, 1, 1], [], []>} : vector<2x32xbf16>, vector<32x128xbf16>, vector<2x128xf32> -> vector<2x128xf32>
    %185 = arith.addf %182, %184 : vector<2x128xf32>
    %186 = vector.extract_strided_slice %185 {offsets = [0, 0], sizes = [2, 96], strides = [1, 1]} : vector<2x128xf32> to vector<2x96xf32>
    %187 = arith.negf %186 : vector<2x96xf32>
    %188 = math.exp %187 : vector<2x96xf32>
    %cst_58 = arith.constant 1.000000e+00 : f32
    %189 = vector.broadcast %cst_58 : f32 to vector<2x96xf32>
    %190 = arith.addf %189, %188 : vector<2x96xf32>
    %191 = arith.divf %189, %190 : vector<2x96xf32>
    %192 = vector.extract_strided_slice %191 {offsets = [0, 0], sizes = [2, 32], strides = [1, 1]} : vector<2x96xf32> to vector<2x32xf32>
    %193 = vector.extract_strided_slice %191 {offsets = [0, 32], sizes = [2, 32], strides = [1, 1]} : vector<2x96xf32> to vector<2x32xf32>
    %194 = vector.extract_strided_slice %191 {offsets = [0, 64], sizes = [2, 32], strides = [1, 1]} : vector<2x96xf32> to vector<2x32xf32>
    %195 = vector.extract_strided_slice %185 {offsets = [0, 96], sizes = [2, 32], strides = [1, 1]} : vector<2x128xf32> to vector<2x32xf32>
    %196 = math.tanh %195 : vector<2x32xf32>
    %197 = arith.mulf %193, %174 : vector<2x32xf32>
    %198 = arith.mulf %192, %196 : vector<2x32xf32>
    %199 = arith.addf %197, %198 : vector<2x32xf32>
    %200 = math.tanh %199 : vector<2x32xf32>
    %201 = arith.mulf %194, %200 : vector<2x32xf32>
    %202 = arith.truncf %201 : vector<2x32xf32> to vector<2x32xbf16>
    %c7_59 = arith.constant 7 : index
    %c0_60 = arith.constant 0 : index
    %c0_61 = arith.constant 0 : index
    %203 = vector.load %arg5[%c7_59, %c0_60, %c0_61] : memref<8x2x32xbf16, #tpu.memory_space<vmem>>, vector<1x2x32xbf16>
    %204 = vector.shape_cast %203 : vector<1x2x32xbf16> to vector<2x32xbf16>
    %205 = vector.shape_cast %202 : vector<2x32xbf16> to vector<1x2x32xbf16>
    tpu.vector_store %arg5[%c7_59, %c0_60, %c0_61], %205 {strides = array<i32>} : memref<8x2x32xbf16, #tpu.memory_space<vmem>>, vector<1x2x32xbf16>,
    %c0_62 = arith.constant 0 : index
    %c0_63 = arith.constant 0 : index
    %206 = vector.load %arg8[%c0_62, %c0_63] : memref<2x32xf32, #tpu.memory_space<vmem>>, vector<2x32xf32>
    tpu.vector_store %arg8[%c0_62, %c0_63], %201 {strides = array<i32>} : memref<2x32xf32, #tpu.memory_space<vmem>>, vector<2x32xf32>,
    %c0_64 = arith.constant 0 : index
    %c0_65 = arith.constant 0 : index
    %207 = vector.load %arg9[%c0_64, %c0_65] : memref<2x32xf32, #tpu.memory_space<vmem>>, vector<2x32xf32>
    tpu.vector_store %arg9[%c0_64, %c0_65], %199 {strides = array<i32>} : memref<2x32xf32, #tpu.memory_space<vmem>>, vector<2x32xf32>,
    %c0_i32_66 = arith.constant 0 : i32
    %208 = arith.cmpi eq, %arg0, %c0_i32_66 : i32
    %209 = arith.extui %208 : i1 to i32
    %c0_i32_67 = arith.constant 0 : i32
    %210 = arith.cmpi ne, %209, %c0_i32_67 : i32
    scf.if %210 {
      %c0_68 = arith.constant 0 : index
      %c0_69 = arith.constant 0 : index
      %211 = vector.load %arg6[%c0_68, %c0_69] : memref<2x32xf32, #tpu.memory_space<vmem>>, vector<2x32xf32>
      tpu.vector_store %arg6[%c0_68, %c0_69], %201 {strides = array<i32>} : memref<2x32xf32, #tpu.memory_space<vmem>>, vector<2x32xf32>,
      %c0_70 = arith.constant 0 : index
      %c0_71 = arith.constant 0 : index
      %212 = vector.load %arg7[%c0_70, %c0_71] : memref<2x32xf32, #tpu.memory_space<vmem>>, vector<2x32xf32>
      tpu.vector_store %arg7[%c0_70, %c0_71], %199 {strides = array<i32>} : memref<2x32xf32, #tpu.memory_space<vmem>>, vector<2x32xf32>,
    } else {
    }
    return
  }
  func.func @transform_0(%arg0: i32) -> (i32, i32, i32) {
    %c0_i32 = arith.constant 0 : i32
    %c0_i32_0 = arith.constant 0 : i32
    %c0_i32_1 = arith.constant 0 : i32
    return %arg0, %c0_i32, %c0_i32_0 : i32, i32, i32
  }
  func.func @transform_1(%arg0: i32) -> (i32, i32) {
    %c0_i32 = arith.constant 0 : i32
    %c0_i32_0 = arith.constant 0 : i32
    %c0_i32_1 = arith.constant 0 : i32
    return %c0_i32, %c0_i32_0 : i32, i32
  }
  func.func @transform_2(%arg0: i32) -> (i32, i32) {
    %c0_i32 = arith.constant 0 : i32
    %c0_i32_0 = arith.constant 0 : i32
    %c0_i32_1 = arith.constant 0 : i32
    return %c0_i32, %c0_i32_0 : i32, i32
  }
  func.func @transform_3(%arg0: i32) -> (i32, i32) {
    %c0_i32 = arith.constant 0 : i32
    %c0_i32_0 = arith.constant 0 : i32
    %c0_i32_1 = arith.constant 0 : i32
    return %c0_i32, %c0_i32_0 : i32, i32
  }
  func.func @transform_4(%arg0: i32) -> (i32, i32, i32) {
    %c0_i32 = arith.constant 0 : i32
    %c0_i32_0 = arith.constant 0 : i32
    %c0_i32_1 = arith.constant 0 : i32
    return %arg0, %c0_i32, %c0_i32_0 : i32, i32, i32
  }
  func.func @transform_5(%arg0: i32) -> (i32, i32) {
    %c0_i32 = arith.constant 0 : i32
    %c0_i32_0 = arith.constant 0 : i32
    %c0_i32_1 = arith.constant 0 : i32
    return %c0_i32, %c0_i32_0 : i32, i32
  }
  func.func @transform_6(%arg0: i32) -> (i32, i32) {
    %c0_i32 = arith.constant 0 : i32
    %c0_i32_0 = arith.constant 0 : i32
    %c0_i32_1 = arith.constant 0 : i32
    return %c0_i32, %c0_i32_0 : i32, i32
  }
}

</mosaic_0001>

<llo_original>
// kernel: rnn_model_forward.5
$region0: #{rnn_model_forward.5}
  #allocation0 [shape = 'u32[]', space=smem, size = 0x4, offset = 0x4, fixed_abs, tag = 'smem constant byte address 0x4 - core index']
  #allocation1 [shape = 'u32[144,128]{1,0:T(1,128)}', space=vmem, size = 0x12000, scoped, tag = 'internal scratch']
  #allocation2 [shape = 'f32[16,128]{1,0:T(8,128)}', space=vmem, size = 0x2000, scoped, tag = 'scratch operand']
  %s0 = inlined_call_operand.vmem [shape: bf16[16,32], index: 0, kind: input, shape index: {}]
  %s1 = inlined_call_operand.vmem [shape: bf16[32,128], index: 1, kind: input, shape index: {}]
  %s2 = inlined_call_operand.vmem [shape: f32[1,128], index: 2, kind: input, shape index: {}]
  %s3 = inlined_call_operand.vmem [shape: f32[16,128], index: 3, kind: output, shape index: {}]
  %s4 = sld [smem:[#allocation0]]
  $region30: #{rnn_model_forward.5} parent=0
    _
  %s6 = ssub.s32 1, %s4
  %s7 = scalar_select 0, %s6, %s4
  // Predicated region
  $region2: #{rnn_model_forward.5} parent=0 // pred_check
    _
  $region3: #{rnn_model_forward.5} parent=0 // pred_check_branch
    %9 = sbr.rel (0) target = $region5
  $region4: #{rnn_model_forward.5} parent=0 // pred_region
    _
  $region5: #{rnn_model_forward.5} parent=0 // pred_fallthru
    _
  // Predicated region
  $region6: #{rnn_model_forward.5} parent=0 // pred_check
    _
  $region7: #{rnn_model_forward.5} parent=0 // pred_check_branch
    %11 = sbr.rel (0) target = $region9
  $region8: #{rnn_model_forward.5} parent=0 // pred_region
    _
  $region9: #{rnn_model_forward.5} parent=0 // pred_fallthru
    _
  // Predicated region
  $region10: #{rnn_model_forward.5} parent=0 // pred_check
    _
  $region11: #{rnn_model_forward.5} parent=0 // pred_check_branch
    %13 = sbr.rel (0) target = $region13
  $region12: #{rnn_model_forward.5} parent=0 // pred_region
    _
  $region13: #{rnn_model_forward.5} parent=0 // pred_fallthru
    _
  %p15 = scmp.eq.s32.totalorder 0, 0
  // Predicated region
  $region14: #{rnn_model_forward.5} parent=0 // pred_check
    %p16 = pneg %p15
  $region15: #{rnn_model_forward.5} parent=0 // pred_check_branch
    %18 = sbr.rel (%p16) target = $region17
  $region16: #{rnn_model_forward.5} parent=0 // pred_region
    %19 = vst [vmem:[#allocation2] sm:$0xff] 0.0
    %20 = vst [vmem:[#allocation2 + $0x8] sm:$0xff] 0.0
  $region17: #{rnn_model_forward.5} parent=0 // pred_fallthru
    _
  %v21 = vld [vmem:[#allocation2] sm:$0xff]
  %v22 = vld [vmem:[#allocation2 + $0x8] sm:$0xff]
  %v23 = vld [vmem:[%s0] sm:$0xf]
  %v24 = vld [vmem:[%s0 + $0x4] sm:$0xf]
  %v25 = vld [vmem:[%s1] sm:$0xf]
  %v26 = vld [vmem:[%s1 + $0x4] sm:$0xf]
  %v27 = vld [vmem:[%s1 + $0x8] sm:$0xf]
  %v28 = vld [vmem:[%s1 + $0xc] sm:$0xf]
  %v31 = vunpack.c.l.b16 %v23
  %v32 = vunpack.c.l.b16 %v24
  %v33 = vpack.c.b16 %v32, %v31
  %v38 = vunpack.c.l.b16 %v25
  %v39 = vunpack.c.l.b16 %v26
  %v40 = vunpack.c.l.b16 %v27
  %v41 = vunpack.c.l.b16 %v28
  %v42 = vpack.c.b16 %v39, %v38
  %v43 = vpack.c.b16 %v41, %v40
  %vm46 = vcmask 261120
  %v48 = vsel %vm46, %v33, 0
  %50 = vmatprep.subr.bf16.mxu0 0
  %51 = vmatpush1.bf16.msra.mxu0 %v42
  %52 = vmatprep.subr.bf16.mxu0 0
  %53 = vmatpush1.bf16.msra.mxu0 %v43
  %54 = vmatprep.subr.bf16.mxu0 0
  %55 = vmatpush1.bf16.msra.mxu0 0
  %56 = vmatprep.subr.bf16.mxu0 0
  %57 = vmatpush1.bf16.msra.mxu0 0
  %58 = vmatprep.subr.bf16.mxu0 0
  %59 = vmatpush1.bf16.msra.mxu0 0
  %60 = vmatprep.subr.bf16.mxu0 0
  %61 = vmatpush1.bf16.msra.mxu0 0
  %62 = vmatprep.subr.bf16.mxu0 0
  %63 = vmatpush1.bf16.msra.mxu0 0
  %64 = vmatprep.subr.bf16.mxu0 0
  %65 = vmatpush1.bf16.msra.mxu0 0
  %66 = vmatprep.subr.bf16.mxu0 0
  %67 = vmatpush1.bf16.msra.mxu0 0
  %68 = vmatprep.subr.bf16.mxu0 0
  %69 = vmatpush1.bf16.msra.mxu0 0
  %70 = vmatprep.subr.bf16.mxu0 0
  %71 = vmatpush1.bf16.msra.mxu0 0
  %72 = vmatprep.subr.bf16.mxu0 0
  %73 = vmatpush1.bf16.msra.mxu0 0
  %74 = vmatprep.subr.bf16.mxu0 0
  %75 = vmatpush1.bf16.msra.mxu0 0
  %76 = vmatprep.subr.bf16.mxu0 0
  %77 = vmatpush1.bf16.msra.mxu0 0
  %78 = vmatprep.subr.bf16.mxu0 0
  %79 = vmatpush1.bf16.msra.mxu0 0
  %80 = vmatprep.subr.bf16.mxu0 0
  %81 = vmatpush1.bf16.msra.mxu0 0
  %82 = vmatprep.mubr.bf16.mxu0 0
  %83 = vmatmul.mubr.bf16.gmra.mrb[0].mxu0 %v48
  %v84 = vpop.f32.mrb[0].mxu0
  %v85 = vadd.f32 0.0, %v84
  %v86 = vpop.f32.mrb[0].mxu0
  %v87 = vpop.f32.mrb[0].mxu0
  %v88 = vadd.f32 0.0, %v87
  %v89 = vpop.f32.mrb[0].mxu0
  %90 = vdwg.mxu0
  %v91 = vadd.f32 %v21, %v85
  %v92 = vadd.f32 %v22, %v88
  %93 = vst [vmem:[#allocation2] sm:$0xff] %v91
  %94 = vst [vmem:[#allocation2 + $0x8] sm:$0xff] %v92
  // Predicated region
  $region18: #{rnn_model_forward.5} parent=0 // pred_check
    %p95 = pneg %p15
  $region19: #{rnn_model_forward.5} parent=0 // pred_check_branch
    %97 = sbr.rel (%p95) target = $region21
  $region20: #{rnn_model_forward.5} parent=0 // pred_region
    %v98 = vld [vmem:[#allocation2] sm:$0xff]
    %v99 = vld [vmem:[#allocation2 + $0x8] sm:$0xff]
    %v100 = vld [vmem:[%s2] sm:$0x1]
    %v102 = vlaneseq
    %v103 = vshrl.u32 %v102, 7
    %v104 = vsub.s32 0, %v103
    %v105 = vrot.slane %v100, %v104
    %v107 = vadd.f32 %v98, %v105
    %v108 = vadd.f32 %v99, %v105
    %109 = vst [vmem:[%s3] sm:$0xff] %v107
    %110 = vst [vmem:[%s3 + $0x8] sm:$0xff] %v108
  $region21: #{rnn_model_forward.5} parent=0 // pred_fallthru
    _
  // Predicated region
  $region22: #{rnn_model_forward.5} parent=0 // pred_check
    _
  $region23: #{rnn_model_forward.5} parent=0 // pred_check_branch
    %112 = sbr.rel (0) target = $region25
  $region24: #{rnn_model_forward.5} parent=0 // pred_region
    _
  $region25: #{rnn_model_forward.5} parent=0 // pred_fallthru
    _
  // Predicated region
  $region26: #{rnn_model_forward.5} parent=0 // pred_check
    _
  $region27: #{rnn_model_forward.5} parent=0 // pred_check_branch
    %114 = sbr.rel (0) target = $region29
  $region28: #{rnn_model_forward.5} parent=0 // pred_region
    _
  $region29: #{rnn_model_forward.5} parent=0 // pred_fallthru
    _

// kernel: rnn_model_forward.9
$region0: #{rnn_model_forward.9}
  #allocation0 [shape = 'u32[]', space=smem, size = 0x4, offset = 0x4, fixed_abs, tag = 'smem constant byte address 0x4 - core index']
  #allocation1 [shape = 'u32[144,128]{1,0:T(1,128)}', space=vmem, size = 0x12000, scoped, tag = 'internal scratch']
  #allocation2 [shape = 'f32[16,128]{1,0:T(8,128)}', space=vmem, size = 0x2000, scoped, tag = 'scratch operand']
  %s0 = inlined_call_operand.vmem [shape: bf16[16,32], index: 0, kind: input, shape index: {}]
  %s1 = inlined_call_operand.vmem [shape: bf16[32,128], index: 1, kind: input, shape index: {}]
  %s2 = inlined_call_operand.vmem [shape: f32[1,128], index: 2, kind: input, shape index: {}]
  %s3 = inlined_call_operand.hbm [shape: f32[16,128], index: 3, kind: output, shape index: {}]
  %s4 = sld [smem:[#allocation0]]
  $region30: #{rnn_model_forward.9} parent=0
    _
  %s6 = ssub.s32 1, %s4
  %s7 = scalar_select 0, %s6, %s4
  $region1: #{rnn_model_forward.9} parent=0
    #allocation3 [shape = 'u8[8192]{0}', space=vmem, size = 0x2000, scoped, tag = 'output window, operand 0, single buffered']
    #allocation4 [shape = 's32[1]{0}', space=sflag, size = 0x4, scoped, tag = 'scoped memory for rnn_model_forward.9']
    %8 = vsyncpa [#allocation4], 0
    // Predicated region
    $region2: #{rnn_model_forward.9} parent=1 // pred_check
      _
    $region3: #{rnn_model_forward.9} parent=1 // pred_check_branch
      %10 = sbr.rel (0) target = $region5
    $region4: #{rnn_model_forward.9} parent=1 // pred_region
      _
    $region5: #{rnn_model_forward.9} parent=1 // pred_fallthru
      _
    // Predicated region
    $region6: #{rnn_model_forward.9} parent=1 // pred_check
      _
    $region7: #{rnn_model_forward.9} parent=1 // pred_check_branch
      %12 = sbr.rel (0) target = $region9
    $region8: #{rnn_model_forward.9} parent=1 // pred_region
      _
    $region9: #{rnn_model_forward.9} parent=1 // pred_fallthru
      _
    // Predicated region
    $region10: #{rnn_model_forward.9} parent=1 // pred_check
      _
    $region11: #{rnn_model_forward.9} parent=1 // pred_check_branch
      %14 = sbr.rel (0) target = $region13
    $region12: #{rnn_model_forward.9} parent=1 // pred_region
      _
    $region13: #{rnn_model_forward.9} parent=1 // pred_fallthru
      _
    %p16 = scmp.eq.s32.totalorder 0, 0
    // Predicated region
    $region14: #{rnn_model_forward.9} parent=1 // pred_check
      %p17 = pneg %p16
    $region15: #{rnn_model_forward.9} parent=1 // pred_check_branch
      %19 = sbr.rel (%p17) target = $region17
    $region16: #{rnn_model_forward.9} parent=1 // pred_region
      %20 = vst [vmem:[#allocation2] sm:$0xff] 0.0
      %21 = vst [vmem:[#allocation2 + $0x8] sm:$0xff] 0.0
    $region17: #{rnn_model_forward.9} parent=1 // pred_fallthru
      _
    %v22 = vld [vmem:[#allocation2] sm:$0xff]
    %v23 = vld [vmem:[#allocation2 + $0x8] sm:$0xff]
    %v24 = vld [vmem:[%s0] sm:$0xf]
    %v25 = vld [vmem:[%s0 + $0x4] sm:$0xf]
    %v26 = vld [vmem:[%s1] sm:$0xf]
    %v27 = vld [vmem:[%s1 + $0x4] sm:$0xf]
    %v28 = vld [vmem:[%s1 + $0x8] sm:$0xf]
    %v29 = vld [vmem:[%s1 + $0xc] sm:$0xf]
    %v32 = vunpack.c.l.b16 %v24
    %v33 = vunpack.c.l.b16 %v25
    %v34 = vpack.c.b16 %v33, %v32
    %v39 = vunpack.c.l.b16 %v26
    %v40 = vunpack.c.l.b16 %v27
    %v41 = vunpack.c.l.b16 %v28
    %v42 = vunpack.c.l.b16 %v29
    %v43 = vpack.c.b16 %v40, %v39
    %v44 = vpack.c.b16 %v42, %v41
    %vm47 = vcmask 261120
    %v49 = vsel %vm47, %v34, 0
    %51 = vmatprep.subr.bf16.mxu0 0
    %52 = vmatpush1.bf16.msra.mxu0 %v43
    %53 = vmatprep.subr.bf16.mxu0 0
    %54 = vmatpush1.bf16.msra.mxu0 %v44
    %55 = vmatprep.subr.bf16.mxu0 0
    %56 = vmatpush1.bf16.msra.mxu0 0
    %57 = vmatprep.subr.bf16.mxu0 0
    %58 = vmatpush1.bf16.msra.mxu0 0
    %59 = vmatprep.subr.bf16.mxu0 0
    %60 = vmatpush1.bf16.msra.mxu0 0
    %61 = vmatprep.subr.bf16.mxu0 0
    %62 = vmatpush1.bf16.msra.mxu0 0
    %63 = vmatprep.subr.bf16.mxu0 0
    %64 = vmatpush1.bf16.msra.mxu0 0
    %65 = vmatprep.subr.bf16.mxu0 0
    %66 = vmatpush1.bf16.msra.mxu0 0
    %67 = vmatprep.subr.bf16.mxu0 0
    %68 = vmatpush1.bf16.msra.mxu0 0
    %69 = vmatprep.subr.bf16.mxu0 0
    %70 = vmatpush1.bf16.msra.mxu0 0
    %71 = vmatprep.subr.bf16.mxu0 0
    %72 = vmatpush1.bf16.msra.mxu0 0
    %73 = vmatprep.subr.bf16.mxu0 0
    %74 = vmatpush1.bf16.msra.mxu0 0
    %75 = vmatprep.subr.bf16.mxu0 0
    %76 = vmatpush1.bf16.msra.mxu0 0
    %77 = vmatprep.subr.bf16.mxu0 0
    %78 = vmatpush1.bf16.msra.mxu0 0
    %79 = vmatprep.subr.bf16.mxu0 0
    %80 = vmatpush1.bf16.msra.mxu0 0
    %81 = vmatprep.subr.bf16.mxu0 0
    %82 = vmatpush1.bf16.msra.mxu0 0
    %83 = vmatprep.mubr.bf16.mxu0 0
    %84 = vmatmul.mubr.bf16.gmra.mrb[0].mxu0 %v49
    %v85 = vpop.f32.mrb[0].mxu0
    %v86 = vadd.f32 0.0, %v85
    %v87 = vpop.f32.mrb[0].mxu0
    %v88 = vpop.f32.mrb[0].mxu0
    %v89 = vadd.f32 0.0, %v88
    %v90 = vpop.f32.mrb[0].mxu0
    %91 = vdwg.mxu0
    %v92 = vadd.f32 %v22, %v86
    %v93 = vadd.f32 %v23, %v89
    %94 = vst [vmem:[#allocation2] sm:$0xff] %v92
    %95 = vst [vmem:[#allocation2 + $0x8] sm:$0xff] %v93
    // Predicated region
    $region18: #{rnn_model_forward.9} parent=1 // pred_check
      %p96 = pneg %p16
    $region19: #{rnn_model_forward.9} parent=1 // pred_check_branch
      %98 = sbr.rel (%p96) target = $region21
    $region20: #{rnn_model_forward.9} parent=1 // pred_region
      %v99 = vld [vmem:[#allocation2] sm:$0xff]
      %v100 = vld [vmem:[#allocation2 + $0x8] sm:$0xff]
      %v101 = vld [vmem:[%s2] sm:$0x1]
      %v103 = vlaneseq
      %v104 = vshrl.u32 %v103, 7
      %v105 = vsub.s32 0, %v104
      %v106 = vrot.slane %v101, %v105
      %v108 = vadd.f32 %v99, %v106
      %v109 = vadd.f32 %v100, %v106
      %110 = vst [vmem:[#allocation3] sm:$0xff] %v108
      %111 = vst [vmem:[#allocation3 + $0x8] sm:$0xff] %v109
    $region21: #{rnn_model_forward.9} parent=1 // pred_fallthru
      _
    // Predicated region
    $region22: #{rnn_model_forward.9} parent=1 // pred_check
      _
    $region23: #{rnn_model_forward.9} parent=1 // pred_check_branch
      %113 = sbr.rel (0) target = $region25
    $region24: #{rnn_model_forward.9} parent=1 // pred_region
      %s115 = ssub.s32 256, 256
      %116 = vsyncadd [#allocation4], %s115
      %s117 = sshll.u32 [#allocation3], 4
      %s118 = int_to_ptr.vmem [resolvable:$true] %s117
      %123 = dma.vmem_to_hbm [thread:$0]  %s118, 256, %s3, [#allocation4], 128, 128, 8
    $region25: #{rnn_model_forward.9} parent=1 // pred_fallthru
      _
    // Predicated region
    $region26: #{rnn_model_forward.9} parent=1 // pred_check
      _
    $region27: #{rnn_model_forward.9} parent=1 // pred_check_branch
      %125 = sbr.rel (0) target = $region29
    $region28: #{rnn_model_forward.9} parent=1 // pred_region
      %126 = dma.done [#allocation4], 256
    $region29: #{rnn_model_forward.9} parent=1 // pred_fallthru
      _
    %127 = vsyncpa [#allocation4], 1

// kernel: rnn_model_forward.6
$region0: #{rnn_model_forward.6}
  #allocation0 [shape = 'u32[]', space=smem, size = 0x4, offset = 0x4, fixed_abs, tag = 'smem constant byte address 0x4 - core index']
  #allocation1 [shape = 'u32[144,128]{1,0:T(1,128)}', space=vmem, size = 0x12000, scoped, tag = 'internal scratch']
  #allocation2 [shape = 'f32[2,32]{1,0:T(2,128)}', space=vmem, size = 0x400, scoped, tag = 'scratch operand']
  #allocation3 [shape = 'f32[2,32]{1,0:T(2,128)}', space=vmem, size = 0x400, scoped, tag = 'scratch operand']
  %s0 = inlined_call_operand.vmem [shape: f32[8,2,128], index: 0, kind: input, shape index: {}]
  %s1 = inlined_call_operand.vmem [shape: bf16[32,128], index: 1, kind: input, shape index: {}]
  %s2 = inlined_call_operand.vmem [shape: f32[2,32], index: 2, kind: input, shape index: {}]
  %s3 = inlined_call_operand.vmem [shape: f32[2,32], index: 3, kind: input, shape index: {}]
  %s4 = inlined_call_operand.vmem [shape: bf16[8,2,32], index: 4, kind: output, shape index: {0}]
  %s5 = inlined_call_operand.vmem [shape: f32[2,32], index: 5, kind: output, shape index: {1}]
  %s6 = inlined_call_operand.vmem [shape: f32[2,32], index: 6, kind: output, shape index: {2}]
  %7 = xla_tuple %s4, %s5, %s6
  %s8 = sld [smem:[#allocation0]]
  $region50: #{rnn_model_forward.6} parent=0
    _
  %s10 = ssub.s32 1, %s8
  %s11 = scalar_select 0, %s10, %s8
  // Predicated region
  $region2: #{rnn_model_forward.6} parent=0 // pred_check
    _
  $region3: #{rnn_model_forward.6} parent=0 // pred_check_branch
    %13 = sbr.rel (0) target = $region5
  $region4: #{rnn_model_forward.6} parent=0 // pred_region
    _
  $region5: #{rnn_model_forward.6} parent=0 // pred_fallthru
    _
  // Predicated region
  $region6: #{rnn_model_forward.6} parent=0 // pred_check
    _
  $region7: #{rnn_model_forward.6} parent=0 // pred_check_branch
    %15 = sbr.rel (0) target = $region9
  $region8: #{rnn_model_forward.6} parent=0 // pred_region
    _
  $region9: #{rnn_model_forward.6} parent=0 // pred_fallthru
    _
  // Predicated region
  $region10: #{rnn_model_forward.6} parent=0 // pred_check
    _
  $region11: #{rnn_model_forward.6} parent=0 // pred_check_branch
    %17 = sbr.rel (0) target = $region13
  $region12: #{rnn_model_forward.6} parent=0 // pred_region
    _
  $region13: #{rnn_model_forward.6} parent=0 // pred_fallthru
    _
  // Predicated region
  $region14: #{rnn_model_forward.6} parent=0 // pred_check
    _
  $region15: #{rnn_model_forward.6} parent=0 // pred_check_branch
    %19 = sbr.rel (0) target = $region17
  $region16: #{rnn_model_forward.6} parent=0 // pred_region
    _
  $region17: #{rnn_model_forward.6} parent=0 // pred_fallthru
    _
  %p21 = scmp.eq.s32.totalorder 0, 0
  // Predicated region
  $region18: #{rnn_model_forward.6} parent=0 // pred_check
    %p22 = pneg %p21
  $region19: #{rnn_model_forward.6} parent=0 // pred_check_branch
    %24 = sbr.rel (%p22) target = $region21
  $region20: #{rnn_model_forward.6} parent=0 // pred_region
    %v25 = vld [vmem:[%s2] sm:$0x3]
    %vm26 = vcmask 254976
    %27 = vst.msk [vmem:[#allocation2] sm:$0x3] %vm26, %v25
    %v28 = vld [vmem:[%s3] sm:$0x3]
    %29 = vst.msk [vmem:[#allocation3] sm:$0x3] %vm26, %v28
  $region21: #{rnn_model_forward.6} parent=0 // pred_fallthru
    _
  %v30 = vld [vmem:[%s1] sm:$0xf]
  %v31 = vld [vmem:[%s1 + $0x4] sm:$0xf]
  %v32 = vld [vmem:[%s1 + $0x8] sm:$0xf]
  %v33 = vld [vmem:[%s1 + $0xc] sm:$0xf]
  %v34 = vld [vmem:[#allocation2] sm:$0x3]
  %v35 = vld [vmem:[#allocation3] sm:$0x3]
  %v36 = vld [vmem:[%s0] sm:$0x3]
  %v37 = vpack.c.bf16 %v34, %v34
  %v42 = vunpack.c.l.b16 %v30
  %v43 = vunpack.c.l.b16 %v31
  %v44 = vunpack.c.l.b16 %v32
  %v45 = vunpack.c.l.b16 %v33
  %v46 = vpack.c.b16 %v43, %v42
  %v47 = vpack.c.b16 %v45, %v44
  %vm50 = vcmask 261120
  %v52 = vsel %vm50, %v37, 0
  %54 = vmatprep.subr.bf16.mxu0 0
  %55 = vmatpush1.bf16.msra.mxu0 %v46
  %56 = vmatprep.subr.bf16.mxu0 0
  %57 = vmatpush1.bf16.msra.mxu0 %v47
  %58 = vmatprep.subr.bf16.mxu0 0
  %59 = vmatpush1.bf16.msra.mxu0 0
  %60 = vmatprep.subr.bf16.mxu0 0
  %61 = vmatpush1.bf16.msra.mxu0 0
  %62 = vmatprep.subr.bf16.mxu0 0
  %63 = vmatpush1.bf16.msra.mxu0 0
  %64 = vmatprep.subr.bf16.mxu0 0
  %65 = vmatpush1.bf16.msra.mxu0 0
  %66 = vmatprep.subr.bf16.mxu0 0
  %67 = vmatpush1.bf16.msra.mxu0 0
  %68 = vmatprep.subr.bf16.mxu0 0
  %69 = vmatpush1.bf16.msra.mxu0 0
  %70 = vmatprep.subr.bf16.mxu0 0
  %71 = vmatpush1.bf16.msra.mxu0 0
  %72 = vmatprep.subr.bf16.mxu0 0
  %73 = vmatpush1.bf16.msra.mxu0 0
  %74 = vmatprep.subr.bf16.mxu0 0
  %75 = vmatpush1.bf16.msra.mxu0 0
  %76 = vmatprep.subr.bf16.mxu0 0
  %77 = vmatpush1.bf16.msra.mxu0 0
  %78 = vmatprep.subr.bf16.mxu0 0
  %79 = vmatpush1.bf16.msra.mxu0 0
  %80 = vmatprep.subr.bf16.mxu0 0
  %81 = vmatpush1.bf16.msra.mxu0 0
  %82 = vmatprep.subr.bf16.mxu0 0
  %83 = vmatpush1.bf16.msra.mxu0 0
  %84 = vmatprep.subr.bf16.mxu0 0
  %85 = vmatpush1.bf16.msra.mxu0 0
  %86 = vmatprep.mubr.bf16.mxu0 0
  %87 = vmatmul.mubr.bf16.gmra.mrb[0].mxu0 %v52
  %v88 = vpop.f32.mrb[0].mxu0
  %v89 = vadd.f32 0.0, %v88
  %v90 = vpop.f32.mrb[0].mxu0
  %v91 = vpop.f32.mrb[0].mxu0
  %v92 = vpop.f32.mrb[0].mxu0
  %93 = vdwg.mxu0
  %v94 = vadd.f32 %v36, %v89
  %v95 = vxor.u32 %v94, 2147483648
  %v96 = vmul.f32 %v95, 1.442695
  %v97 = vpow.pop %v96
  %v98 = vadd.f32 %v97, 1.0
  %v99 = vrcp.pop %v98
  %v100 = vmul.f32 1.0, %v99
  %v101 = vtanh.pop %v94
  %103 = vrot.lane.b32.xlu0 %v35, 32
  %v104 = vpop.permute.xlu0 %103
  %v106 = vmul.f32 %v100, %v104
  %108 = vrot.lane.b32.xlu0 %v101, 32
  %v109 = vpop.permute.xlu0 %108
  %v111 = vmul.f32 %v100, %v109
  %113 = vrot.lane.b32.xlu0 %v111, 32
  %v114 = vpop.permute.xlu0 %113
  %v116 = vadd.f32 %v106, %v114
  %v117 = vtanh.pop %v116
  %119 = vrot.lane.b32.xlu0 %v117, 32
  %v120 = vpop.permute.xlu0 %119
  %v122 = vmul.f32 %v100, %v120
  %v123 = vpack.c.bf16 %v122, %v122
  %v126 = vunpack.c.l.s4 1966171168
  %v127 = vunpack.c.0.s8 %v126
  %v128 = vlaneseq
  %v129 = vshrl.u32 %v128, 7
  %v130 = vsub.s32 %v127, %v129
  %v131 = vrot.slane %v123, %v130
  %v133 = vunpack.c.l.s4 1966171168
  %v134 = vunpack.c.0.s8 %v133
  %v135 = vlaneseq
  %v136 = vshrl.u32 %v135, 7
  %v137 = vsub.s32 %v134, %v136
  %v138 = vrot.slane %v131, %v137
  %139 = vrot.lane.b32.xlu0 %v138, 64
  %v140 = vpop.permute.xlu0 %139
  %vm142 = vcmask 253952
  %143 = vst.msk [vmem:[%s4] sm:$0x1] %vm142, %v140
  %s144 = scalar_lea.vmem %s0, 2
  %v145 = vld [vmem:[%s144] sm:$0x3]
  %146 = vrot.lane.b32.xlu0 %v123, 64
  %v147 = vpop.permute.xlu0 %146
  %v149 = vsel %vm50, %v147, 0
  %151 = vmatprep.subr.bf16.mxu0 0
  %152 = vmatpush1.bf16.msra.mxu0 %v46
  %153 = vmatprep.subr.bf16.mxu0 0
  %154 = vmatpush1.bf16.msra.mxu0 %v47
  %155 = vmatprep.subr.bf16.mxu0 0
  %156 = vmatpush1.bf16.msra.mxu0 0
  %157 = vmatprep.subr.bf16.mxu0 0
  %158 = vmatpush1.bf16.msra.mxu0 0
  %159 = vmatprep.subr.bf16.mxu0 0
  %160 = vmatpush1.bf16.msra.mxu0 0
  %161 = vmatprep.subr.bf16.mxu0 0
  %162 = vmatpush1.bf16.msra.mxu0 0
  %163 = vmatprep.subr.bf16.mxu0 0
  %164 = vmatpush1.bf16.msra.mxu0 0
  %165 = vmatprep.subr.bf16.mxu0 0
  %166 = vmatpush1.bf16.msra.mxu0 0
  %167 = vmatprep.subr.bf16.mxu0 0
  %168 = vmatpush1.bf16.msra.mxu0 0
  %169 = vmatprep.subr.bf16.mxu0 0
  %170 = vmatpush1.bf16.msra.mxu0 0
  %171 = vmatprep.subr.bf16.mxu0 0
  %172 = vmatpush1.bf16.msra.mxu0 0
  %173 = vmatprep.subr.bf16.mxu0 0
  %174 = vmatpush1.bf16.msra.mxu0 0
  %175 = vmatprep.subr.bf16.mxu0 0
  %176 = vmatpush1.bf16.msra.mxu0 0
  %177 = vmatprep.subr.bf16.mxu0 0
  %178 = vmatpush1.bf16.msra.mxu0 0
  %179 = vmatprep.subr.bf16.mxu0 0
  %180 = vmatpush1.bf16.msra.mxu0 0
  %181 = vmatprep.subr.bf16.mxu0 0
  %182 = vmatpush1.bf16.msra.mxu0 0
  %183 = vmatprep.mubr.bf16.mxu0 0
  %184 = vmatmul.mubr.bf16.gmra.mrb[0].mxu0 %v149
  %v185 = vpop.f32.mrb[0].mxu0
  %v186 = vadd.f32 0.0, %v185
  %v187 = vpop.f32.mrb[0].mxu0
  %v188 = vpop.f32.mrb[0].mxu0
  %v189 = vpop.f32.mrb[0].mxu0
  %190 = vdwg.mxu0
  %v191 = vadd.f32 %v145, %v186
  %v192 = vxor.u32 %v191, 2147483648
  %v193 = vmul.f32 %v192, 1.442695
  %v194 = vpow.pop %v193
  %v195 = vadd.f32 %v194, 1.0
  %v196 = vrcp.pop %v195
  %v197 = vmul.f32 1.0, %v196
  %v198 = vtanh.pop %v191
  %v199 = vmul.f32 %v197, %v116
  %201 = vrot.lane.b32.xlu0 %v198, 32
  %v202 = vpop.permute.xlu0 %201
  %v204 = vmul.f32 %v197, %v202
  %206 = vrot.lane.b32.xlu0 %v204, 32
  %v207 = vpop.permute.xlu0 %206
  %v209 = vadd.f32 %v199, %v207
  %v210 = vtanh.pop %v209
  %212 = vrot.lane.b32.xlu0 %v210, 32
  %v213 = vpop.permute.xlu0 %212
  %v215 = vmul.f32 %v197, %v213
  %v216 = vpack.c.bf16 %v215, %v215
  %v219 = vunpack.c.l.s4 1966171168
  %v220 = vunpack.c.0.s8 %v219
  %v221 = vlaneseq
  %v222 = vshrl.u32 %v221, 7
  %v223 = vsub.s32 %v220, %v222
  %v224 = vrot.slane %v216, %v223
  %v226 = vunpack.c.l.s4 1966171168
  %v227 = vunpack.c.0.s8 %v226
  %v228 = vlaneseq
  %v229 = vshrl.u32 %v228, 7
  %v230 = vsub.s32 %v227, %v229
  %v231 = vrot.slane %v224, %v230
  %232 = vrot.lane.b32.xlu0 %v231, 64
  %v233 = vpop.permute.xlu0 %232
  %s235 = scalar_lea.vmem %s4, 1
  %236 = vst.msk [vmem:[%s235] sm:$0x1] %vm142, %v233
  %s237 = scalar_lea.vmem %s0, 4
  %v238 = vld [vmem:[%s237] sm:$0x3]
  %239 = vrot.lane.b32.xlu0 %v216, 64
  %v240 = vpop.permute.xlu0 %239
  %v242 = vsel %vm50, %v240, 0
  %244 = vmatprep.subr.bf16.mxu0 0
  %245 = vmatpush1.bf16.msra.mxu0 %v46
  %246 = vmatprep.subr.bf16.mxu0 0
  %247 = vmatpush1.bf16.msra.mxu0 %v47
  %248 = vmatprep.subr.bf16.mxu0 0
  %249 = vmatpush1.bf16.msra.mxu0 0
  %250 = vmatprep.subr.bf16.mxu0 0
  %251 = vmatpush1.bf16.msra.mxu0 0
  %252 = vmatprep.subr.bf16.mxu0 0
  %253 = vmatpush1.bf16.msra.mxu0 0
  %254 = vmatprep.subr.bf16.mxu0 0
  %255 = vmatpush1.bf16.msra.mxu0 0
  %256 = vmatprep.subr.bf16.mxu0 0
  %257 = vmatpush1.bf16.msra.mxu0 0
  %258 = vmatprep.subr.bf16.mxu0 0
  %259 = vmatpush1.bf16.msra.mxu0 0
  %260 = vmatprep.subr.bf16.mxu0 0
  %261 = vmatpush1.bf16.msra.mxu0 0
  %262 = vmatprep.subr.bf16.mxu0 0
  %263 = vmatpush1.bf16.msra.mxu0 0
  %264 = vmatprep.subr.bf16.mxu0 0
  %265 = vmatpush1.bf16.msra.mxu0 0
  %266 = vmatprep.subr.bf16.mxu0 0
  %267 = vmatpush1.bf16.msra.mxu0 0
  %268 = vmatprep.subr.bf16.mxu0 0
  %269 = vmatpush1.bf16.msra.mxu0 0
  %270 = vmatprep.subr.bf16.mxu0 0
  %271 = vmatpush1.bf16.msra.mxu0 0
  %272 = vmatprep.subr.bf16.mxu0 0
  %273 = vmatpush1.bf16.msra.mxu0 0
  %274 = vmatprep.subr.bf16.mxu0 0
  %275 = vmatpush1.bf16.msra.mxu0 0
  %276 = vmatprep.mubr.bf16.mxu0 0
  %277 = vmatmul.mubr.bf16.gmra.mrb[0].mxu0 %v242
  %v278 = vpop.f32.mrb[0].mxu0
  %v279 = vadd.f32 0.0, %v278
  %v280 = vpop.f32.mrb[0].mxu0
  %v281 = vpop.f32.mrb[0].mxu0
  %v282 = vpop.f32.mrb[0].mxu0
  %283 = vdwg.mxu0
  %v284 = vadd.f32 %v238, %v279
  %v285 = vxor.u32 %v284, 2147483648
  %v286 = vmul.f32 %v285, 1.442695
  %v287 = vpow.pop %v286
  %v288 = vadd.f32 %v287, 1.0
  %v289 = vrcp.pop %v288
  %v290 = vmul.f32 1.0, %v289
  %v291 = vtanh.pop %v284
  %v292 = vmul.f32 %v290, %v209
  %294 = vrot.lane.b32.xlu0 %v291, 32
  %v295 = vpop.permute.xlu0 %294
  %v297 = vmul.f32 %v290, %v295
  %299 = vrot.lane.b32.xlu0 %v297, 32
  %v300 = vpop.permute.xlu0 %299
  %v302 = vadd.f32 %v292, %v300
  %v303 = vtanh.pop %v302
  %305 = vrot.lane.b32.xlu0 %v303, 32
  %v306 = vpop.permute.xlu0 %305
  %v308 = vmul.f32 %v290, %v306
  %v309 = vpack.c.bf16 %v308, %v308
  %v312 = vunpack.c.l.s4 1966171168
  %v313 = vunpack.c.0.s8 %v312
  %v314 = vlaneseq
  %v315 = vshrl.u32 %v314, 7
  %v316 = vsub.s32 %v313, %v315
  %v317 = vrot.slane %v309, %v316
  %v319 = vunpack.c.l.s4 1966171168
  %v320 = vunpack.c.0.s8 %v319
  %v321 = vlaneseq
  %v322 = vshrl.u32 %v321, 7
  %v323 = vsub.s32 %v320, %v322
  %v324 = vrot.slane %v317, %v323
  %325 = vrot.lane.b32.xlu0 %v324, 64
  %v326 = vpop.permute.xlu0 %325
  %s328 = scalar_lea.vmem %s4, 2
  %329 = vst.msk [vmem:[%s328] sm:$0x1] %vm142, %v326
  %s330 = scalar_lea.vmem %s0, 6
  %v331 = vld [vmem:[%s330] sm:$0x3]
  %332 = vrot.lane.b32.xlu0 %v309, 64
  %v333 = vpop.permute.xlu0 %332
  %v335 = vsel %vm50, %v333, 0
  %337 = vmatprep.subr.bf16.mxu0 0
  %338 = vmatpush1.bf16.msra.mxu0 %v46
  %339 = vmatprep.subr.bf16.mxu0 0
  %340 = vmatpush1.bf16.msra.mxu0 %v47
  %341 = vmatprep.subr.bf16.mxu0 0
  %342 = vmatpush1.bf16.msra.mxu0 0
  %343 = vmatprep.subr.bf16.mxu0 0
  %344 = vmatpush1.bf16.msra.mxu0 0
  %345 = vmatprep.subr.bf16.mxu0 0
  %346 = vmatpush1.bf16.msra.mxu0 0
  %347 = vmatprep.subr.bf16.mxu0 0
  %348 = vmatpush1.bf16.msra.mxu0 0
  %349 = vmatprep.subr.bf16.mxu0 0
  %350 = vmatpush1.bf16.msra.mxu0 0
  %351 = vmatprep.subr.bf16.mxu0 0
  %352 = vmatpush1.bf16.msra.mxu0 0
  %353 = vmatprep.subr.bf16.mxu0 0
  %354 = vmatpush1.bf16.msra.mxu0 0
  %355 = vmatprep.subr.bf16.mxu0 0
  %356 = vmatpush1.bf16.msra.mxu0 0
  %357 = vmatprep.subr.bf16.mxu0 0
  %358 = vmatpush1.bf16.msra.mxu0 0
  %359 = vmatprep.subr.bf16.mxu0 0
  %360 = vmatpush1.bf16.msra.mxu0 0
  %361 = vmatprep.subr.bf16.mxu0 0
  %362 = vmatpush1.bf16.msra.mxu0 0
  %363 = vmatprep.subr.bf16.mxu0 0
  %364 = vmatpush1.bf16.msra.mxu0 0
  %365 = vmatprep.subr.bf16.mxu0 0
  %366 = vmatpush1.bf16.msra.mxu0 0
  %367 = vmatprep.subr.bf16.mxu0 0
  %368 = vmatpush1.bf16.msra.mxu0 0
  %369 = vmatprep.mubr.bf16.mxu0 0
  %370 = vmatmul.mubr.bf16.gmra.mrb[0].mxu0 %v335
  %v371 = vpop.f32.mrb[0].mxu0
  %v372 = vadd.f32 0.0, %v371
  %v373 = vpop.f32.mrb[0].mxu0
  %v374 = vpop.f32.mrb[0].mxu0
  %v375 = vpop.f32.mrb[0].mxu0
  %376 = vdwg.mxu0
  %v377 = vadd.f32 %v331, %v372
  %v378 = vxor.u32 %v377, 2147483648
  %v379 = vmul.f32 %v378, 1.442695
  %v380 = vpow.pop %v379
  %v381 = vadd.f32 %v380, 1.0
  %v382 = vrcp.pop %v381
  %v383 = vmul.f32 1.0, %v382
  %v384 = vtanh.pop %v377
  %v385 = vmul.f32 %v383, %v302
  %387 = vrot.lane.b32.xlu0 %v384, 32
  %v388 = vpop.permute.xlu0 %387
  %v390 = vmul.f32 %v383, %v388
  %392 = vrot.lane.b32.xlu0 %v390, 32
  %v393 = vpop.permute.xlu0 %392
  %v395 = vadd.f32 %v385, %v393
  %v396 = vtanh.pop %v395
  %398 = vrot.lane.b32.xlu0 %v396, 32
  %v399 = vpop.permute.xlu0 %398
  %v401 = vmul.f32 %v383, %v399
  %v402 = vpack.c.bf16 %v401, %v401
  %v405 = vunpack.c.l.s4 1966171168
  %v406 = vunpack.c.0.s8 %v405
  %v407 = vlaneseq
  %v408 = vshrl.u32 %v407, 7
  %v409 = vsub.s32 %v406, %v408
  %v410 = vrot.slane %v402, %v409
  %v412 = vunpack.c.l.s4 1966171168
  %v413 = vunpack.c.0.s8 %v412
  %v414 = vlaneseq
  %v415 = vshrl.u32 %v414, 7
  %v416 = vsub.s32 %v413, %v415
  %v417 = vrot.slane %v410, %v416
  %418 = vrot.lane.b32.xlu0 %v417, 64
  %v419 = vpop.permute.xlu0 %418
  %s421 = scalar_lea.vmem %s4, 3
  %422 = vst.msk [vmem:[%s421] sm:$0x1] %vm142, %v419
  %s423 = scalar_lea.vmem %s0, 8
  %v424 = vld [vmem:[%s423] sm:$0x3]
  %425 = vrot.lane.b32.xlu0 %v402, 64
  %v426 = vpop.permute.xlu0 %425
  %v428 = vsel %vm50, %v426, 0
  %430 = vmatprep.subr.bf16.mxu0 0
  %431 = vmatpush1.bf16.msra.mxu0 %v46
  %432 = vmatprep.subr.bf16.mxu0 0
  %433 = vmatpush1.bf16.msra.mxu0 %v47
  %434 = vmatprep.subr.bf16.mxu0 0
  %435 = vmatpush1.bf16.msra.mxu0 0
  %436 = vmatprep.subr.bf16.mxu0 0
  %437 = vmatpush1.bf16.msra.mxu0 0
  %438 = vmatprep.subr.bf16.mxu0 0
  %439 = vmatpush1.bf16.msra.mxu0 0
  %440 = vmatprep.subr.bf16.mxu0 0
  %441 = vmatpush1.bf16.msra.mxu0 0
  %442 = vmatprep.subr.bf16.mxu0 0
  %443 = vmatpush1.bf16.msra.mxu0 0
  %444 = vmatprep.subr.bf16.mxu0 0
  %445 = vmatpush1.bf16.msra.mxu0 0
  %446 = vmatprep.subr.bf16.mxu0 0
  %447 = vmatpush1.bf16.msra.mxu0 0
  %448 = vmatprep.subr.bf16.mxu0 0
  %449 = vmatpush1.bf16.msra.mxu0 0
  %450 = vmatprep.subr.bf16.mxu0 0
  %451 = vmatpush1.bf16.msra.mxu0 0
  %452 = vmatprep.subr.bf16.mxu0 0
  %453 = vmatpush1.bf16.msra.mxu0 0
  %454 = vmatprep.subr.bf16.mxu0 0
  %455 = vmatpush1.bf16.msra.mxu0 0
  %456 = vmatprep.subr.bf16.mxu0 0
  %457 = vmatpush1.bf16.msra.mxu0 0
  %458 = vmatprep.subr.bf16.mxu0 0
  %459 = vmatpush1.bf16.msra.mxu0 0
  %460 = vmatprep.subr.bf16.mxu0 0
  %461 = vmatpush1.bf16.msra.mxu0 0
  %462 = vmatprep.mubr.bf16.mxu0 0
  %463 = vmatmul.mubr.bf16.gmra.mrb[0].mxu0 %v428
  %v464 = vpop.f32.mrb[0].mxu0
  %v465 = vadd.f32 0.0, %v464
  %v466 = vpop.f32.mrb[0].mxu0
  %v467 = vpop.f32.mrb[0].mxu0
  %v468 = vpop.f32.mrb[0].mxu0
  %469 = vdwg.mxu0
  %v470 = vadd.f32 %v424, %v465
  %v471 = vxor.u32 %v470, 2147483648
  %v472 = vmul.f32 %v471, 1.442695
  %v473 = vpow.pop %v472
  %v474 = vadd.f32 %v473, 1.0
  %v475 = vrcp.pop %v474
  %v476 = vmul.f32 1.0, %v475
  %v477 = vtanh.pop %v470
  %v478 = vmul.f32 %v476, %v395
  %480 = vrot.lane.b32.xlu0 %v477, 32
  %v481 = vpop.permute.xlu0 %480
  %v483 = vmul.f32 %v476, %v481
  %485 = vrot.lane.b32.xlu0 %v483, 32
  %v486 = vpop.permute.xlu0 %485
  %v488 = vadd.f32 %v478, %v486
  %v489 = vtanh.pop %v488
  %491 = vrot.lane.b32.xlu0 %v489, 32
  %v492 = vpop.permute.xlu0 %491
  %v494 = vmul.f32 %v476, %v492
  %v495 = vpack.c.bf16 %v494, %v494
  %v498 = vunpack.c.l.s4 1966171168
  %v499 = vunpack.c.0.s8 %v498
  %v500 = vlaneseq
  %v501 = vshrl.u32 %v500, 7
  %v502 = vsub.s32 %v499, %v501
  %v503 = vrot.slane %v495, %v502
  %v505 = vunpack.c.l.s4 1966171168
  %v506 = vunpack.c.0.s8 %v505
  %v507 = vlaneseq
  %v508 = vshrl.u32 %v507, 7
  %v509 = vsub.s32 %v506, %v508
  %v510 = vrot.slane %v503, %v509
  %511 = vrot.lane.b32.xlu0 %v510, 64
  %v512 = vpop.permute.xlu0 %511
  %s514 = scalar_lea.vmem %s4, 4
  %515 = vst.msk [vmem:[%s514] sm:$0x1] %vm142, %v512
  %s516 = scalar_lea.vmem %s0, 10
  %v517 = vld [vmem:[%s516] sm:$0x3]
  %518 = vrot.lane.b32.xlu0 %v495, 64
  %v519 = vpop.permute.xlu0 %518
  %v521 = vsel %vm50, %v519, 0
  %523 = vmatprep.subr.bf16.mxu0 0
  %524 = vmatpush1.bf16.msra.mxu0 %v46
  %525 = vmatprep.subr.bf16.mxu0 0
  %526 = vmatpush1.bf16.msra.mxu0 %v47
  %527 = vmatprep.subr.bf16.mxu0 0
  %528 = vmatpush1.bf16.msra.mxu0 0
  %529 = vmatprep.subr.bf16.mxu0 0
  %530 = vmatpush1.bf16.msra.mxu0 0
  %531 = vmatprep.subr.bf16.mxu0 0
  %532 = vmatpush1.bf16.msra.mxu0 0
  %533 = vmatprep.subr.bf16.mxu0 0
  %534 = vmatpush1.bf16.msra.mxu0 0
  %535 = vmatprep.subr.bf16.mxu0 0
  %536 = vmatpush1.bf16.msra.mxu0 0
  %537 = vmatprep.subr.bf16.mxu0 0
  %538 = vmatpush1.bf16.msra.mxu0 0
  %539 = vmatprep.subr.bf16.mxu0 0
  %540 = vmatpush1.bf16.msra.mxu0 0
  %541 = vmatprep.subr.bf16.mxu0 0
  %542 = vmatpush1.bf16.msra.mxu0 0
  %543 = vmatprep.subr.bf16.mxu0 0
  %544 = vmatpush1.bf16.msra.mxu0 0
  %545 = vmatprep.subr.bf16.mxu0 0
  %546 = vmatpush1.bf16.msra.mxu0 0
  %547 = vmatprep.subr.bf16.mxu0 0
  %548 = vmatpush1.bf16.msra.mxu0 0
  %549 = vmatprep.subr.bf16.mxu0 0
  %550 = vmatpush1.bf16.msra.mxu0 0
  %551 = vmatprep.subr.bf16.mxu0 0
  %552 = vmatpush1.bf16.msra.mxu0 0
  %553 = vmatprep.subr.bf16.mxu0 0
  %554 = vmatpush1.bf16.msra.mxu0 0
  %555 = vmatprep.mubr.bf16.mxu0 0
  %556 = vmatmul.mubr.bf16.gmra.mrb[0].mxu0 %v521
  %v557 = vpop.f32.mrb[0].mxu0
  %v558 = vadd.f32 0.0, %v557
  %v559 = vpop.f32.mrb[0].mxu0
  %v560 = vpop.f32.mrb[0].mxu0
  %v561 = vpop.f32.mrb[0].mxu0
  %562 = vdwg.mxu0
  %v563 = vadd.f32 %v517, %v558
  %v564 = vxor.u32 %v563, 2147483648
  %v565 = vmul.f32 %v564, 1.442695
  %v566 = vpow.pop %v565
  %v567 = vadd.f32 %v566, 1.0
  %v568 = vrcp.pop %v567
  %v569 = vmul.f32 1.0, %v568
  %v570 = vtanh.pop %v563
  %v571 = vmul.f32 %v569, %v488
  %573 = vrot.lane.b32.xlu0 %v570, 32
  %v574 = vpop.permute.xlu0 %573
  %v576 = vmul.f32 %v569, %v574
  %578 = vrot.lane.b32.xlu0 %v576, 32
  %v579 = vpop.permute.xlu0 %578
  %v581 = vadd.f32 %v571, %v579
  %v582 = vtanh.pop %v581
  %584 = vrot.lane.b32.xlu0 %v582, 32
  %v585 = vpop.permute.xlu0 %584
  %v587 = vmul.f32 %v569, %v585
  %v588 = vpack.c.bf16 %v587, %v587
  %v591 = vunpack.c.l.s4 1966171168
  %v592 = vunpack.c.0.s8 %v591
  %v593 = vlaneseq
  %v594 = vshrl.u32 %v593, 7
  %v595 = vsub.s32 %v592, %v594
  %v596 = vrot.slane %v588, %v595
  %v598 = vunpack.c.l.s4 1966171168
  %v599 = vunpack.c.0.s8 %v598
  %v600 = vlaneseq
  %v601 = vshrl.u32 %v600, 7
  %v602 = vsub.s32 %v599, %v601
  %v603 = vrot.slane %v596, %v602
  %604 = vrot.lane.b32.xlu0 %v603, 64
  %v605 = vpop.permute.xlu0 %604
  %s607 = scalar_lea.vmem %s4, 5
  %608 = vst.msk [vmem:[%s607] sm:$0x1] %vm142, %v605
  %s609 = scalar_lea.vmem %s0, 12
  %v610 = vld [vmem:[%s609] sm:$0x3]
  %611 = vrot.lane.b32.xlu0 %v588, 64
  %v612 = vpop.permute.xlu0 %611
  %v614 = vsel %vm50, %v612, 0
  %616 = vmatprep.subr.bf16.mxu0 0
  %617 = vmatpush1.bf16.msra.mxu0 %v46
  %618 = vmatprep.subr.bf16.mxu0 0
  %619 = vmatpush1.bf16.msra.mxu0 %v47
  %620 = vmatprep.subr.bf16.mxu0 0
  %621 = vmatpush1.bf16.msra.mxu0 0
  %622 = vmatprep.subr.bf16.mxu0 0
  %623 = vmatpush1.bf16.msra.mxu0 0
  %624 = vmatprep.subr.bf16.mxu0 0
  %625 = vmatpush1.bf16.msra.mxu0 0
  %626 = vmatprep.subr.bf16.mxu0 0
  %627 = vmatpush1.bf16.msra.mxu0 0
  %628 = vmatprep.subr.bf16.mxu0 0
  %629 = vmatpush1.bf16.msra.mxu0 0
  %630 = vmatprep.subr.bf16.mxu0 0
  %631 = vmatpush1.bf16.msra.mxu0 0
  %632 = vmatprep.subr.bf16.mxu0 0
  %633 = vmatpush1.bf16.msra.mxu0 0
  %634 = vmatprep.subr.bf16.mxu0 0
  %635 = vmatpush1.bf16.msra.mxu0 0
  %636 = vmatprep.subr.bf16.mxu0 0
  %637 = vmatpush1.bf16.msra.mxu0 0
  %638 = vmatprep.subr.bf16.mxu0 0
  %639 = vmatpush1.bf16.msra.mxu0 0
  %640 = vmatprep.subr.bf16.mxu0 0
  %641 = vmatpush1.bf16.msra.mxu0 0
  %642 = vmatprep.subr.bf16.mxu0 0
  %643 = vmatpush1.bf16.msra.mxu0 0
  %644 = vmatprep.subr.bf16.mxu0 0
  %645 = vmatpush1.bf16.msra.mxu0 0
  %646 = vmatprep.subr.bf16.mxu0 0
  %647 = vmatpush1.bf16.msra.mxu0 0
  %648 = vmatprep.mubr.bf16.mxu0 0
  %649 = vmatmul.mubr.bf16.gmra.mrb[0].mxu0 %v614
  %v650 = vpop.f32.mrb[0].mxu0
  %v651 = vadd.f32 0.0, %v650
  %v652 = vpop.f32.mrb[0].mxu0
  %v653 = vpop.f32.mrb[0].mxu0
  %v654 = vpop.f32.mrb[0].mxu0
  %655 = vdwg.mxu0
  %v656 = vadd.f32 %v610, %v651
  %v657 = vxor.u32 %v656, 2147483648
  %v658 = vmul.f32 %v657, 1.442695
  %v659 = vpow.pop %v658
  %v660 = vadd.f32 %v659, 1.0
  %v661 = vrcp.pop %v660
  %v662 = vmul.f32 1.0, %v661
  %v663 = vtanh.pop %v656
  %v664 = vmul.f32 %v662, %v581
  %666 = vrot.lane.b32.xlu0 %v663, 32
  %v667 = vpop.permute.xlu0 %666
  %v669 = vmul.f32 %v662, %v667
  %671 = vrot.lane.b32.xlu0 %v669, 32
  %v672 = vpop.permute.xlu0 %671
  %v674 = vadd.f32 %v664, %v672
  %v675 = vtanh.pop %v674
  %677 = vrot.lane.b32.xlu0 %v675, 32
  %v678 = vpop.permute.xlu0 %677
  %v680 = vmul.f32 %v662, %v678
  %v681 = vpack.c.bf16 %v680, %v680
  %v684 = vunpack.c.l.s4 1966171168
  %v685 = vunpack.c.0.s8 %v684
  %v686 = vlaneseq
  %v687 = vshrl.u32 %v686, 7
  %v688 = vsub.s32 %v685, %v687
  %v689 = vrot.slane %v681, %v688
  %v691 = vunpack.c.l.s4 1966171168
  %v692 = vunpack.c.0.s8 %v691
  %v693 = vlaneseq
  %v694 = vshrl.u32 %v693, 7
  %v695 = vsub.s32 %v692, %v694
  %v696 = vrot.slane %v689, %v695
  %697 = vrot.lane.b32.xlu0 %v696, 64
  %v698 = vpop.permute.xlu0 %697
  %s700 = scalar_lea.vmem %s4, 6
  %701 = vst.msk [vmem:[%s700] sm:$0x1] %vm142, %v698
  %s702 = scalar_lea.vmem %s0, 14
  %v703 = vld [vmem:[%s702] sm:$0x3]
  %704 = vrot.lane.b32.xlu0 %v681, 64
  %v705 = vpop.permute.xlu0 %704
  %v707 = vsel %vm50, %v705, 0
  %709 = vmatprep.subr.bf16.mxu0 0
  %710 = vmatpush1.bf16.msra.mxu0 %v46
  %711 = vmatprep.subr.bf16.mxu0 0
  %712 = vmatpush1.bf16.msra.mxu0 %v47
  %713 = vmatprep.subr.bf16.mxu0 0
  %714 = vmatpush1.bf16.msra.mxu0 0
  %715 = vmatprep.subr.bf16.mxu0 0
  %716 = vmatpush1.bf16.msra.mxu0 0
  %717 = vmatprep.subr.bf16.mxu0 0
  %718 = vmatpush1.bf16.msra.mxu0 0
  %719 = vmatprep.subr.bf16.mxu0 0
  %720 = vmatpush1.bf16.msra.mxu0 0
  %721 = vmatprep.subr.bf16.mxu0 0
  %722 = vmatpush1.bf16.msra.mxu0 0
  %723 = vmatprep.subr.bf16.mxu0 0
  %724 = vmatpush1.bf16.msra.mxu0 0
  %725 = vmatprep.subr.bf16.mxu0 0
  %726 = vmatpush1.bf16.msra.mxu0 0
  %727 = vmatprep.subr.bf16.mxu0 0
  %728 = vmatpush1.bf16.msra.mxu0 0
  %729 = vmatprep.subr.bf16.mxu0 0
  %730 = vmatpush1.bf16.msra.mxu0 0
  %731 = vmatprep.subr.bf16.mxu0 0
  %732 = vmatpush1.bf16.msra.mxu0 0
  %733 = vmatprep.subr.bf16.mxu0 0
  %734 = vmatpush1.bf16.msra.mxu0 0
  %735 = vmatprep.subr.bf16.mxu0 0
  %736 = vmatpush1.bf16.msra.mxu0 0
  %737 = vmatprep.subr.bf16.mxu0 0
  %738 = vmatpush1.bf16.msra.mxu0 0
  %739 = vmatprep.subr.bf16.mxu0 0
  %740 = vmatpush1.bf16.msra.mxu0 0
  %741 = vmatprep.mubr.bf16.mxu0 0
  %742 = vmatmul.mubr.bf16.gmra.mrb[0].mxu0 %v707
  %v743 = vpop.f32.mrb[0].mxu0
  %v744 = vadd.f32 0.0, %v743
  %v745 = vpop.f32.mrb[0].mxu0
  %v746 = vpop.f32.mrb[0].mxu0
  %v747 = vpop.f32.mrb[0].mxu0
  %748 = vdwg.mxu0
  %v749 = vadd.f32 %v703, %v744
  %v750 = vxor.u32 %v749, 2147483648
  %v751 = vmul.f32 %v750, 1.442695
  %v752 = vpow.pop %v751
  %v753 = vadd.f32 %v752, 1.0
  %v754 = vrcp.pop %v753
  %v755 = vmul.f32 1.0, %v754
  %v756 = vtanh.pop %v749
  %v757 = vmul.f32 %v755, %v674
  %759 = vrot.lane.b32.xlu0 %v756, 32
  %v760 = vpop.permute.xlu0 %759
  %v762 = vmul.f32 %v755, %v760
  %764 = vrot.lane.b32.xlu0 %v762, 32
  %v765 = vpop.permute.xlu0 %764
  %v767 = vadd.f32 %v757, %v765
  %v768 = vtanh.pop %v767
  %770 = vrot.lane.b32.xlu0 %v768, 32
  %v771 = vpop.permute.xlu0 %770
  %v773 = vmul.f32 %v755, %v771
  %v774 = vpack.c.bf16 %v773, %v773
  %v777 = vunpack.c.l.s4 1966171168
  %v778 = vunpack.c.0.s8 %v777
  %v779 = vlaneseq
  %v780 = vshrl.u32 %v779, 7
  %v781 = vsub.s32 %v778, %v780
  %v782 = vrot.slane %v774, %v781
  %v784 = vunpack.c.l.s4 1966171168
  %v785 = vunpack.c.0.s8 %v784
  %v786 = vlaneseq
  %v787 = vshrl.u32 %v786, 7
  %v788 = vsub.s32 %v785, %v787
  %v789 = vrot.slane %v782, %v788
  %790 = vrot.lane.b32.xlu0 %v789, 64
  %v791 = vpop.permute.xlu0 %790
  %s793 = scalar_lea.vmem %s4, 7
  %794 = vst.msk [vmem:[%s793] sm:$0x1] %vm142, %v791
  %796 = vrot.lane.b32.xlu0 %v773, 64
  %v797 = vpop.permute.xlu0 %796
  %vm799 = vcmask 254976
  %800 = vst.msk [vmem:[#allocation2] sm:$0x3] %vm799, %v797
  %802 = vrot.lane.b32.xlu0 %v767, 96
  %v803 = vpop.permute.xlu0 %802
  %805 = vst.msk [vmem:[#allocation3] sm:$0x3] %vm799, %v803
  // Predicated region
  $region22: #{rnn_model_forward.6} parent=0 // pred_check
    %p806 = pneg %p21
  $region23: #{rnn_model_forward.6} parent=0 // pred_check_branch
    %808 = sbr.rel (%p806) target = $region25
  $region24: #{rnn_model_forward.6} parent=0 // pred_region
    %809 = vst.msk [vmem:[%s5] sm:$0x3] %vm799, %v797
    %810 = vst.msk [vmem:[%s6] sm:$0x3] %vm799, %v803
  $region25: #{rnn_model_forward.6} parent=0 // pred_fallthru
    _
  // Predicated region
  $region26: #{rnn_model_forward.6} parent=0 // pred_check
    _
  $region27: #{rnn_model_forward.6} parent=0 // pred_check_branch
    %812 = sbr.rel (0) target = $region29
  $region28: #{rnn_model_forward.6} parent=0 // pred_region
    _
  $region29: #{rnn_model_forward.6} parent=0 // pred_fallthru
    _
  // Predicated region
  $region30: #{rnn_model_forward.6} parent=0 // pred_check
    _
  $region31: #{rnn_model_forward.6} parent=0 // pred_check_branch
    %814 = sbr.rel (0) target = $region33
  $region32: #{rnn_model_forward.6} parent=0 // pred_region
    _
  $region33: #{rnn_model_forward.6} parent=0 // pred_fallthru
    _
  // Predicated region
  $region34: #{rnn_model_forward.6} parent=0 // pred_check
    _
  $region35: #{rnn_model_forward.6} parent=0 // pred_check_branch
    %816 = sbr.rel (0) target = $region37
  $region36: #{rnn_model_forward.6} parent=0 // pred_region
    _
  $region37: #{rnn_model_forward.6} parent=0 // pred_fallthru
    _
  // Predicated region
  $region38: #{rnn_model_forward.6} parent=0 // pred_check
    _
  $region39: #{rnn_model_forward.6} parent=0 // pred_check_branch
    %818 = sbr.rel (0) target = $region41
  $region40: #{rnn_model_forward.6} parent=0 // pred_region
    _
  $region41: #{rnn_model_forward.6} parent=0 // pred_fallthru
    _
  // Predicated region
  $region42: #{rnn_model_forward.6} parent=0 // pred_check
    _
  $region43: #{rnn_model_forward.6} parent=0 // pred_check_branch
    %820 = sbr.rel (0) target = $region45
  $region44: #{rnn_model_forward.6} parent=0 // pred_region
    _
  $region45: #{rnn_model_forward.6} parent=0 // pred_fallthru
    _
  // Predicated region
  $region46: #{rnn_model_forward.6} parent=0 // pred_check
    _
  $region47: #{rnn_model_forward.6} parent=0 // pred_check_branch
    %822 = sbr.rel (0) target = $region49
  $region48: #{rnn_model_forward.6} parent=0 // pred_region
    _
  $region49: #{rnn_model_forward.6} parent=0 // pred_fallthru
    _

</llo_original>
